<compile_context>
chip_gen: v7x
topology: tpu7x:2x2x1
jax: 0.10.0
libtpu: 0.0.40
codegen_flags: <defaults>
</compile_context>

<pallas_src>
import functools

import jax
import jax.numpy as jnp
import numpy as np
from jax.experimental import pallas as pl
from jax.experimental.pallas import tpu as pltpu


def mlstm_cell_kernel(q_ref, k_ref, v_ref, cf_ref, en_ref, g_ref, out_ref, *,
                      eps, mxu_dtype, approx_recip):
    """One (batch, query-row-tile) step; heads unrolled statically inside."""
    _, NH, TQ, DH = q_ref.shape
    S = k_ref.shape[2]
    DHa = v_ref.shape[3]
    use_vaug = DHa != DH                     # ones column appended to v in the wrapper

    r0 = pl.program_id(1) * TQ               # first global query row of this tile
    row_l = jax.lax.broadcasted_iota(jnp.int32, (TQ, S), 0)
    col = jax.lax.broadcasted_iota(jnp.int32, (TQ, S), 1)
    ltr = (row_l + r0) >= col                 # causal mask for this row tile

    cf_all = cf_ref[0, 0]                     # (NH, S)  f32: exp(m_j - s_t) * DH**-0.5
    en_all = en_ref[0]                        # (NH, TQ, 1) f32: exp(-fcs_i - s_t)
    g_all = g_ref[...]                        # (NH, 1, DH) f32

    for h in range(NH):                       # NH small & static -> unrolled
        # q_tile @ k^T on the MXU (operands already in mxu_dtype, f32 accumulation)
        qk = jax.lax.dot_general(q_ref[0, h], k_ref[0, h], (((1,), (1,)), ((), ())),
                                 preferred_element_type=jnp.float32)          # (TQ, S)
        # decay-weighted, causally masked scores (row decay factor folded into the
        # normalizer below, so this is rank-1 column scaling only; masked lanes may
        # hold inf from the wrapper-side exp -> where() discards them).
        c = jnp.where(ltr, qk * cf_all[h:h + 1, :], 0.0)                       # (TQ, S) f32

        # single matmul gives value aggregation (and the row-sum when v is augmented)
        u = jnp.dot(c.astype(mxu_dtype), v_ref[0, h],
                    preferred_element_type=jnp.float32)                        # (TQ, DHa)
        if use_vaug:
            h_raw, rowsum = u[:, :DH], u[:, DH:DH + 1]
        else:
            h_raw = u
            rowsum = jnp.sum(c, axis=-1, keepdims=True)                        # f32 XLU sum

        norm = jnp.maximum(jnp.abs(rowsum), en_all[h]) + eps                   # (TQ, 1)
        inv = pl.reciprocal(norm, approx=True) if approx_recip else 1.0 / norm
        hv = h_raw * inv                                                       # (TQ, DH)

        # MultiHeadLayerNorm (per-head group norm, eps=1e-5, bias=False) + gamma slice
        mu = jnp.mean(hv, axis=-1, keepdims=True)
        xc = hv - mu
        var = jnp.mean(xc * xc, axis=-1, keepdims=True)
        y = xc * jax.lax.rsqrt(var + 1e-5) * g_all[h]                          # (TQ, DH)

        # static lane-slice write into the resident lane-dense (TQ, E) output block
        out_ref[0, :, h * DH:(h + 1) * DH] = y.astype(out_ref.dtype)


@functools.partial(jax.jit, static_argnames=("num_heads", "mxu_dtype"))
def mlstm_cell_forward(q, k, v, params, *, num_heads, mxu_dtype=jnp.bfloat16):
    B, S, E = q.shape
    NH = num_heads
    assert E % NH == 0
    DH = E // NH

    wi, wf = params["igate_w"], params["fgate_w"]          # (NH, 3E)
    bi, bf = params["igate_b"], params["fgate_b"]          # (NH,)

    # Gate pre-activations as wrapper-level GEMMs on the f32 originals (no (B,S,3E) concat).
    qf, kf, vf = (q.astype(jnp.float32), k.astype(jnp.float32), v.astype(jnp.float32))
    ig = qf @ wi[:, :E].T + kf @ wi[:, E:2 * E].T + vf @ wi[:, 2 * E:].T + bi   # (B, S, NH)
    fg = qf @ wf[:, :E].T + kf @ wf[:, E:2 * E].T + vf @ wf[:, 2 * E:].T + bf   # (B, S, NH)

    logfg = jax.nn.log_sigmoid(fg)                         # stable (log1p-based)
    fcs = jnp.cumsum(logfg, axis=1)                        # (B, S, NH) cumulative log forget
    m = ig - fcs                                           # (B, S, NH)
    cm = jax.lax.cummax(m, axis=1)                         # running max -> max_log_D = fcs + cm

    TQ = S if S <= 128 else 128                            # query row-tile size
    if S % TQ != 0:
        raise ValueError("sequence length must be <=128 or a multiple of 128")
    NT = S // TQ

    scale = DH ** -0.5
    shifts = cm[:, ::TQ, :]                                # (B, NT, NH): s_t = cm[tile_start]
    # Column decay factors per row tile: exp(m_j - s_t) (DH**-0.5 folded in).  Values for
    # j beyond a tile's causal range may overflow; they are masked inside the kernel.
    colfac = scale * jnp.exp(m[:, None, :, :] - shifts[:, :, None, :])          # (B, NT, S, NH)
    colfac = jnp.transpose(colfac, (0, 1, 3, 2))                                # (B, NT, NH, S)
    # Normalizer lower bound with the row decay factor folded in:
    #   exp(-max_log_D_i) / exp(s_t - cm_i) = exp(-fcs_i - s_t)
    s_row = jnp.repeat(shifts, TQ, axis=1)                                      # (B, S, NH)
    en2 = jnp.exp(-fcs - s_row)                                                 # (B, S, NH)
    en2 = jnp.transpose(en2, (0, 2, 1))[..., None]                              # (B, NH, S, 1)

    # Head-major q/k/v in the MXU dtype; ones column appended to v when DH has lane slack
    # so one matmul also produces the row-sum needed by the normalizer.
    def to_heads(x):
        return jnp.transpose(x.reshape(B, S, NH, DH), (0, 2, 1, 3))             # (B, NH, S, DH)

    q_h = to_heads(q).astype(mxu_dtype)
    k_h = to_heads(k).astype(mxu_dtype)
    v_h = to_heads(v)
    use_vaug = (DH % 128) != 0
    if use_vaug:
        v_h = jnp.concatenate([v_h, jnp.ones((B, NH, S, 1), v_h.dtype)], axis=-1)
    v_h = v_h.astype(mxu_dtype)
    DHa = DH + 1 if use_vaug else DH

    gamma = params["outnorm_w"].astype(jnp.float32).reshape(NH, 1, DH)

    # VMEM budget derived from the actual chip (v7x has 64 MiB vs 128 MiB on v5e/v6e).
    try:
        vmem_cap = int(pltpu.get_tpu_info().vmem_capacity_bytes)
    except Exception:  # pragma: no cover - conservative fallback
        vmem_cap = 64 * 1024 * 1024
    vmem_limit = max(32 * 1024 * 1024,
                     min(vmem_cap - 16 * 1024 * 1024, 100 * 1024 * 1024))

    kernel = functools.partial(
        mlstm_cell_kernel, eps=1e-6, mxu_dtype=mxu_dtype,
        approx_recip=(mxu_dtype != jnp.float32))

    return pl.pallas_call(
        kernel,
        out_shape=jax.ShapeDtypeStruct((B, S, E), q.dtype),
        grid=(B, NT),
        in_specs=[
            pl.BlockSpec((1, NH, TQ, DH), lambda b, t: (b, 0, t, 0)),   # q rows of this tile
            pl.BlockSpec((1, NH, S, DH), lambda b, t: (b, 0, 0, 0)),    # k (resident across t)
            pl.BlockSpec((1, NH, S, DHa), lambda b, t: (b, 0, 0, 0)),   # v (+ ones column)
            pl.BlockSpec((1, 1, NH, S), lambda b, t: (b, t, 0, 0)),     # column decay factors
            pl.BlockSpec((1, NH, TQ, 1), lambda b, t: (b, 0, t, 0)),    # normalizer lower bound
            pl.BlockSpec((NH, 1, DH), lambda b, t: (0, 0, 0)),          # outnorm gamma
        ],
        out_specs=pl.BlockSpec((1, TQ, E), lambda b, t: (b, t, 0)),
        compiler_params=pltpu.CompilerParams(
            dimension_semantics=("parallel", "parallel"),
            vmem_limit_bytes=vmem_limit),
    )(q_h, k_h, v_h, colfac, en2, gamma)


def init_params(key, embedding_dim, num_heads):
    """Deterministic init matching mLSTMCell.reset_parameters()."""
    NH, E = num_heads, embedding_dim
    return {
        # torch.nn.init.zeros_ on gate weights
        "igate_w": jnp.zeros((NH, 3 * E), jnp.float32),
        "fgate_w": jnp.zeros((NH, 3 * E), jnp.float32),
        # bias_linspace_init_(fgate.bias, 3.0, 6.0)
        "fgate_b": jnp.linspace(3.0, 6.0, NH, dtype=jnp.float32),
        # normal_(igate.bias, mean=0.0, std=0.1)
        "igate_b": 0.1 * jax.random.normal(key, (NH,), jnp.float32),
        # MultiHeadLayerNorm: weight=ones(E); config.bias=False -> no bias param
        "outnorm_w": jnp.ones((E,), jnp.float32),
    }


def mlstm_cell_reference(q, k, v, params, num_heads, eps=1e-6, mxu_dtype=jnp.float32):
    """Pure-JAX mirror of the PyTorch forward (parallel_stabilized_simple + outnorm)."""
    B, S, E = q.shape
    NH, DH = num_heads, E // num_heads
    x = jnp.concatenate([q, k, v], axis=-1)
    ig = x @ params["igate_w"].T + params["igate_b"]            # (B, S, NH)
    fg = x @ params["fgate_w"].T + params["fgate_b"]
    ig = jnp.transpose(ig, (0, 2, 1))[..., None]                # (B, NH, S, 1)
    fg = jnp.transpose(fg, (0, 2, 1))[..., None]
    qh = q.reshape(B, S, NH, DH).transpose(0, 2, 1, 3)
    kh = k.reshape(B, S, NH, DH).transpose(0, 2, 1, 3)
    vh = v.reshape(B, S, NH, DH).transpose(0, 2, 1, 3)

    log_f = jax.nn.log_sigmoid(fg)
    csum = jnp.cumsum(log_f, axis=2)                            # (B, NH, S, 1)
    fg_mat = csum - jnp.swapaxes(csum, -1, -2)                  # (B, NH, S, S)
    mask = jnp.tril(jnp.ones((S, S), bool))
    log_D = jnp.where(mask, fg_mat, -jnp.inf) + jnp.swapaxes(ig, -1, -2)
    max_log_D = jnp.max(log_D, axis=-1, keepdims=True)
    D = jnp.exp(log_D - max_log_D)
    qh_s = (qh * (DH ** -0.5)).astype(mxu_dtype)
    qk = jnp.einsum("bhsd,bhtd->bhst", qh_s, kh.astype(mxu_dtype),
                    preferred_element_type=jnp.float32, precision="highest")
    C = qk * D
    normalizer = jnp.maximum(jnp.abs(C.sum(-1, keepdims=True)), jnp.exp(-max_log_D))
    Cn = C / (normalizer + eps)
    h = jnp.einsum("bhst,bhtd->bhsd", Cn.astype(mxu_dtype), vh.astype(mxu_dtype),
                   preferred_element_type=jnp.float32, precision="highest")
    mean = h.mean(-1, keepdims=True)
    var = ((h - mean) ** 2).mean(-1, keepdims=True)
    hn = (h - mean) / jnp.sqrt(var + 1e-5)
    hn = hn * params["outnorm_w"].reshape(1, NH, 1, DH)
    return hn.transpose(0, 2, 1, 3).reshape(B, S, E)


if __name__ == "__main__":
    # config: context_length=16, embedding_dim=64, num_heads=4, bias=False
    B, S, E, NH = 2, 16, 64, 4

    root = jax.random.PRNGKey(0)
    k_q, k_k, k_v, k_p = jax.random.split(root, 4)
    q = jax.random.normal(k_q, (B, S, E), jnp.float32)
    k = jax.random.normal(k_k, (B, S, E), jnp.float32)
    v = jax.random.normal(k_v, (B, S, E), jnp.float32)
    params = init_params(k_p, E, NH)

    # 1) Strict semantic check: f32 MXU path vs. the PyTorch-mirroring f32 reference.
    out_f32 = jax.block_until_ready(
        mlstm_cell_forward(q, k, v, params, num_heads=NH, mxu_dtype=jnp.float32))
    assert out_f32.shape == (B, S, E)
    ref_f32 = jax.block_until_ready(
        mlstm_cell_reference(q, k, v, params, NH, mxu_dtype=jnp.float32))
    np.testing.assert_allclose(np.asarray(out_f32), np.asarray(ref_f32),
                               rtol=2e-3, atol=2e-3)

    # 2) Fast path (default): bf16 MXU operands, f32 decay/stabilization/normalization.
    #    (un-normalized scores are cast to bf16 before the value matmul -> ~1e-2 accuracy;
    #    the per-head LayerNorm is invariant to the per-row normalizer scale, so the
    #    approximate reciprocal / MXU row-sum do not add visible error.)
    out_bf16 = jax.block_until_ready(
        mlstm_cell_forward(q, k, v, params, num_heads=NH))     # mxu_dtype=bfloat16
    assert out_bf16.shape == (B, S, E)
    ref_bf16 = jax.block_until_ready(
        mlstm_cell_reference(q, k, v, params, NH, mxu_dtype=jnp.bfloat16))
    np.testing.assert_allclose(np.asarray(out_bf16), np.asarray(ref_bf16),
                               rtol=1e-2, atol=1e-2)

    print("KERNEL_OK")
</pallas_src>

<mosaic_0001>
module attributes {stable_mosaic.version = 11 : i64} {
  func.func @mlstm_cell_kernel(%arg0: i32, %arg1: i32, %arg2: memref<1x4x16x16xf32, #tpu.memory_space<vmem>>, %arg3: memref<1x4x16x16xf32, #tpu.memory_space<vmem>>, %arg4: memref<1x4x16x17xf32, #tpu.memory_space<vmem>>, %arg5: memref<1x1x4x16xf32, #tpu.memory_space<vmem>>, %arg6: memref<1x4x16x1xf32, #tpu.memory_space<vmem>>, %arg7: memref<4x1x16xf32, #tpu.memory_space<vmem>>, %arg8: memref<1x16x64xf32, #tpu.memory_space<vmem>>) attributes {dimension_semantics = [#tpu.dimension_semantics<parallel>, #tpu.dimension_semantics<parallel>], iteration_bounds = array<i64: 2, 1>, scalar_prefetch = 0 : i64, scratch_operands = 0 : i64, tpu.core_type = #tpu.core_type<tc>, window_params = [{transform_indices = @transform_0, window_bounds = array<i64: 1, 4, 16, 16>}, {transform_indices = @transform_1, window_bounds = array<i64: 1, 4, 16, 16>}, {transform_indices = @transform_2, window_bounds = array<i64: 1, 4, 16, 17>}, {transform_indices = @transform_3, window_bounds = array<i64: 1, 1, 4, 16>}, {transform_indices = @transform_4, window_bounds = array<i64: 1, 4, 16, 1>}, {pipeline_mode = #tpu.pipeline_mode<synchronous>, transform_indices = @transform_5, window_bounds = array<i64: 4, 1, 16>}, {transform_indices = @transform_6, window_bounds = array<i64: 1, 16, 64>}]} {
    %c16_i32 = arith.constant 16 : i32
    %0 = arith.muli %arg1, %c16_i32 : i32
    %1 = tpu.iota {dimensions = array<i32: 0>} : vector<16x16xi32>
    %2 = tpu.iota {dimensions = array<i32: 1>} : vector<16x16xi32>
    %3 = vector.broadcast %0 : i32 to vector<16x16xi32>
    %4 = arith.addi %1, %3 : vector<16x16xi32>
    %5 = arith.cmpi sge, %4, %2 : vector<16x16xi32>
    %c0 = arith.constant 0 : index
    %c0_0 = arith.constant 0 : index
    %c0_1 = arith.constant 0 : index
    %c0_2 = arith.constant 0 : index
    %6 = vector.load %arg5[%c0, %c0_0, %c0_1, %c0_2] : memref<1x1x4x16xf32, #tpu.memory_space<vmem>>, vector<1x1x4x16xf32>
    %7 = vector.shape_cast %6 : vector<1x1x4x16xf32> to vector<4x16xf32>
    %c0_3 = arith.constant 0 : index
    %c0_4 = arith.constant 0 : index
    %c0_5 = arith.constant 0 : index
    %c0_6 = arith.constant 0 : index
    %8 = vector.load %arg6[%c0_3, %c0_4, %c0_5, %c0_6] : memref<1x4x16x1xf32, #tpu.memory_space<vmem>>, vector<1x4x16x1xf32>
    %9 = vector.shape_cast %8 : vector<1x4x16x1xf32> to vector<4x16x1xf32>
    %c0_7 = arith.constant 0 : index
    %c0_8 = arith.constant 0 : index
    %c0_9 = arith.constant 0 : index
    %10 = vector.load %arg7[%c0_7, %c0_8, %c0_9] : memref<4x1x16xf32, #tpu.memory_space<vmem>>, vector<4x1x16xf32>
    %c0_10 = arith.constant 0 : index
    %c0_11 = arith.constant 0 : index
    %c0_12 = arith.constant 0 : index
    %c0_13 = arith.constant 0 : index
    %11 = vector.load %arg2[%c0_10, %c0_11, %c0_12, %c0_13] : memref<1x4x16x16xf32, #tpu.memory_space<vmem>>, vector<1x1x16x16xf32>
    %12 = vector.shape_cast %11 : vector<1x1x16x16xf32> to vector<16x16xf32>
    %c0_14 = arith.constant 0 : index
    %c0_15 = arith.constant 0 : index
    %c0_16 = arith.constant 0 : index
    %c0_17 = arith.constant 0 : index
    %13 = vector.load %arg3[%c0_14, %c0_15, %c0_16, %c0_17] : memref<1x4x16x16xf32, #tpu.memory_space<vmem>>, vector<1x1x16x16xf32>
    %14 = vector.shape_cast %13 : vector<1x1x16x16xf32> to vector<16x16xf32>
    %cst = arith.constant dense<0.000000e+00> : vector<16x16xf32>
    %15 = tpu.matmul %12, %14, %cst {dimension_numbers = #tpu.dot_dimension_numbers<[1], [1], [0], [0], [0, 0, 1, 0], [], []>} : vector<16x16xf32>, vector<16x16xf32>, vector<16x16xf32> -> vector<16x16xf32>
    %16 = vector.extract_strided_slice %7 {offsets = [0, 0], sizes = [1, 16], strides = [1, 1]} : vector<4x16xf32> to vector<1x16xf32>
    %17 = vector.broadcast %16 : vector<1x16xf32> to vector<16x16xf32>
    %18 = arith.mulf %15, %17 : vector<16x16xf32>
    %cst_18 = arith.constant 0.000000e+00 : f32
    %19 = vector.broadcast %cst_18 : f32 to vector<16x16xf32>
    %20 = arith.select %5, %18, %19 : vector<16x16xi1>, vector<16x16xf32>
    %c0_19 = arith.constant 0 : index
    %c0_20 = arith.constant 0 : index
    %c0_21 = arith.constant 0 : index
    %c0_22 = arith.constant 0 : index
    %21 = vector.load %arg4[%c0_19, %c0_20, %c0_21, %c0_22] : memref<1x4x16x17xf32, #tpu.memory_space<vmem>>, vector<1x1x16x17xf32>
    %22 = vector.shape_cast %21 : vector<1x1x16x17xf32> to vector<16x17xf32>
    %cst_23 = arith.constant dense<0.000000e+00> : vector<16x17xf32>
    %23 = tpu.matmul %20, %22, %cst_23 {dimension_numbers = #tpu.dot_dimension_numbers<[1], [0], [0], [1], [0, 0, 1, 1], [], []>} : vector<16x16xf32>, vector<16x17xf32>, vector<16x17xf32> -> vector<16x17xf32>
    %24 = vector.extract_strided_slice %23 {offsets = [0, 0], sizes = [16, 16], strides = [1, 1]} : vector<16x17xf32> to vector<16x16xf32>
    %25 = vector.extract_strided_slice %23 {offsets = [0, 16], sizes = [16, 1], strides = [1, 1]} : vector<16x17xf32> to vector<16x1xf32>
    %26 = math.absf %25 : vector<16x1xf32>
    %27 = vector.extract_strided_slice %9 {offsets = [0, 0, 0], sizes = [1, 16, 1], strides = [1, 1, 1]} : vector<4x16x1xf32> to vector<1x16x1xf32>
    %28 = vector.shape_cast %27 : vector<1x16x1xf32> to vector<16x1xf32>
    %29 = arith.maximumf %26, %28 : vector<16x1xf32>
    %cst_24 = arith.constant 9.99999997E-7 : f32
    %30 = vector.broadcast %cst_24 : f32 to vector<16x1xf32>
    %31 = arith.addf %29, %30 : vector<16x1xf32>
    %cst_25 = arith.constant 1.000000e+00 : f32
    %32 = vector.broadcast %cst_25 : f32 to vector<16x1xf32>
    %33 = arith.divf %32, %31 : vector<16x1xf32>
    %34 = vector.broadcast %33 : vector<16x1xf32> to vector<16x16xf32>
    %35 = arith.mulf %24, %34 : vector<16x16xf32>
    %cst_26 = arith.constant dense<0.000000e+00> : vector<16xf32>
    %36 = vector.multi_reduction <add>, %35, %cst_26 [1] : vector<16x16xf32> to vector<16xf32>
    %37 = vector.shape_cast %36 : vector<16xf32> to vector<16x1xf32>
    %cst_27 = arith.constant 1.600000e+01 : f32
    %38 = vector.broadcast %cst_27 : f32 to vector<16x1xf32>
    %39 = arith.divf %37, %38 : vector<16x1xf32>
    %40 = vector.broadcast %39 : vector<16x1xf32> to vector<16x16xf32>
    %41 = arith.subf %35, %40 : vector<16x16xf32>
    %42 = arith.mulf %41, %41 : vector<16x16xf32>
    %cst_28 = arith.constant dense<0.000000e+00> : vector<16xf32>
    %43 = vector.multi_reduction <add>, %42, %cst_28 [1] : vector<16x16xf32> to vector<16xf32>
    %44 = vector.shape_cast %43 : vector<16xf32> to vector<16x1xf32>
    %cst_29 = arith.constant 1.600000e+01 : f32
    %45 = vector.broadcast %cst_29 : f32 to vector<16x1xf32>
    %46 = arith.divf %44, %45 : vector<16x1xf32>
    %cst_30 = arith.constant 9.99999974E-6 : f32
    %47 = vector.broadcast %cst_30 : f32 to vector<16x1xf32>
    %48 = arith.addf %46, %47 : vector<16x1xf32>
    %49 = math.rsqrt %48 : vector<16x1xf32>
    %50 = vector.broadcast %49 : vector<16x1xf32> to vector<16x16xf32>
    %51 = arith.mulf %41, %50 : vector<16x16xf32>
    %52 = vector.extract_strided_slice %10 {offsets = [0, 0, 0], sizes = [1, 1, 16], strides = [1, 1, 1]} : vector<4x1x16xf32> to vector<1x1x16xf32>
    %53 = vector.shape_cast %52 : vector<1x1x16xf32> to vector<1x16xf32>
    %54 = vector.broadcast %53 : vector<1x16xf32> to vector<16x16xf32>
    %55 = arith.mulf %51, %54 : vector<16x16xf32>
    %c0_31 = arith.constant 0 : index
    %c0_32 = arith.constant 0 : index
    %c0_33 = arith.constant 0 : index
    %56 = vector.load %arg8[%c0_31, %c0_32, %c0_33] : memref<1x16x64xf32, #tpu.memory_space<vmem>>, vector<1x16x16xf32>
    %57 = vector.shape_cast %56 : vector<1x16x16xf32> to vector<16x16xf32>
    %58 = vector.shape_cast %55 : vector<16x16xf32> to vector<1x16x16xf32>
    tpu.vector_store %arg8[%c0_31, %c0_32, %c0_33], %58 {strides = array<i32>} : memref<1x16x64xf32, #tpu.memory_space<vmem>>, vector<1x16x16xf32>,
    %c0_34 = arith.constant 0 : index
    %c1 = arith.constant 1 : index
    %c0_35 = arith.constant 0 : index
    %c0_36 = arith.constant 0 : index
    %59 = vector.load %arg2[%c0_34, %c1, %c0_35, %c0_36] : memref<1x4x16x16xf32, #tpu.memory_space<vmem>>, vector<1x1x16x16xf32>
    %60 = vector.shape_cast %59 : vector<1x1x16x16xf32> to vector<16x16xf32>
    %c0_37 = arith.constant 0 : index
    %c1_38 = arith.constant 1 : index
    %c0_39 = arith.constant 0 : index
    %c0_40 = arith.constant 0 : index
    %61 = vector.load %arg3[%c0_37, %c1_38, %c0_39, %c0_40] : memref<1x4x16x16xf32, #tpu.memory_space<vmem>>, vector<1x1x16x16xf32>
    %62 = vector.shape_cast %61 : vector<1x1x16x16xf32> to vector<16x16xf32>
    %cst_41 = arith.constant dense<0.000000e+00> : vector<16x16xf32>
    %63 = tpu.matmul %60, %62, %cst_41 {dimension_numbers = #tpu.dot_dimension_numbers<[1], [1], [0], [0], [0, 0, 1, 0], [], []>} : vector<16x16xf32>, vector<16x16xf32>, vector<16x16xf32> -> vector<16x16xf32>
    %64 = vector.extract_strided_slice %7 {offsets = [1, 0], sizes = [1, 16], strides = [1, 1]} : vector<4x16xf32> to vector<1x16xf32>
    %65 = vector.broadcast %64 : vector<1x16xf32> to vector<16x16xf32>
    %66 = arith.mulf %63, %65 : vector<16x16xf32>
    %cst_42 = arith.constant 0.000000e+00 : f32
    %67 = vector.broadcast %cst_42 : f32 to vector<16x16xf32>
    %68 = arith.select %5, %66, %67 : vector<16x16xi1>, vector<16x16xf32>
    %c0_43 = arith.constant 0 : index
    %c1_44 = arith.constant 1 : index
    %c0_45 = arith.constant 0 : index
    %c0_46 = arith.constant 0 : index
    %69 = vector.load %arg4[%c0_43, %c1_44, %c0_45, %c0_46] : memref<1x4x16x17xf32, #tpu.memory_space<vmem>>, vector<1x1x16x17xf32>
    %70 = vector.shape_cast %69 : vector<1x1x16x17xf32> to vector<16x17xf32>
    %cst_47 = arith.constant dense<0.000000e+00> : vector<16x17xf32>
    %71 = tpu.matmul %68, %70, %cst_47 {dimension_numbers = #tpu.dot_dimension_numbers<[1], [0], [0], [1], [0, 0, 1, 1], [], []>} : vector<16x16xf32>, vector<16x17xf32>, vector<16x17xf32> -> vector<16x17xf32>
    %72 = vector.extract_strided_slice %71 {offsets = [0, 0], sizes = [16, 16], strides = [1, 1]} : vector<16x17xf32> to vector<16x16xf32>
    %73 = vector.extract_strided_slice %71 {offsets = [0, 16], sizes = [16, 1], strides = [1, 1]} : vector<16x17xf32> to vector<16x1xf32>
    %74 = math.absf %73 : vector<16x1xf32>
    %75 = vector.extract_strided_slice %9 {offsets = [1, 0, 0], sizes = [1, 16, 1], strides = [1, 1, 1]} : vector<4x16x1xf32> to vector<1x16x1xf32>
    %76 = vector.shape_cast %75 : vector<1x16x1xf32> to vector<16x1xf32>
    %77 = arith.maximumf %74, %76 : vector<16x1xf32>
    %cst_48 = arith.constant 9.99999997E-7 : f32
    %78 = vector.broadcast %cst_48 : f32 to vector<16x1xf32>
    %79 = arith.addf %77, %78 : vector<16x1xf32>
    %cst_49 = arith.constant 1.000000e+00 : f32
    %80 = vector.broadcast %cst_49 : f32 to vector<16x1xf32>
    %81 = arith.divf %80, %79 : vector<16x1xf32>
    %82 = vector.broadcast %81 : vector<16x1xf32> to vector<16x16xf32>
    %83 = arith.mulf %72, %82 : vector<16x16xf32>
    %cst_50 = arith.constant dense<0.000000e+00> : vector<16xf32>
    %84 = vector.multi_reduction <add>, %83, %cst_50 [1] : vector<16x16xf32> to vector<16xf32>
    %85 = vector.shape_cast %84 : vector<16xf32> to vector<16x1xf32>
    %cst_51 = arith.constant 1.600000e+01 : f32
    %86 = vector.broadcast %cst_51 : f32 to vector<16x1xf32>
    %87 = arith.divf %85, %86 : vector<16x1xf32>
    %88 = vector.broadcast %87 : vector<16x1xf32> to vector<16x16xf32>
    %89 = arith.subf %83, %88 : vector<16x16xf32>
    %90 = arith.mulf %89, %89 : vector<16x16xf32>
    %cst_52 = arith.constant dense<0.000000e+00> : vector<16xf32>
    %91 = vector.multi_reduction <add>, %90, %cst_52 [1] : vector<16x16xf32> to vector<16xf32>
    %92 = vector.shape_cast %91 : vector<16xf32> to vector<16x1xf32>
    %cst_53 = arith.constant 1.600000e+01 : f32
    %93 = vector.broadcast %cst_53 : f32 to vector<16x1xf32>
    %94 = arith.divf %92, %93 : vector<16x1xf32>
    %cst_54 = arith.constant 9.99999974E-6 : f32
    %95 = vector.broadcast %cst_54 : f32 to vector<16x1xf32>
    %96 = arith.addf %94, %95 : vector<16x1xf32>
    %97 = math.rsqrt %96 : vector<16x1xf32>
    %98 = vector.broadcast %97 : vector<16x1xf32> to vector<16x16xf32>
    %99 = arith.mulf %89, %98 : vector<16x16xf32>
    %100 = vector.extract_strided_slice %10 {offsets = [1, 0, 0], sizes = [1, 1, 16], strides = [1, 1, 1]} : vector<4x1x16xf32> to vector<1x1x16xf32>
    %101 = vector.shape_cast %100 : vector<1x1x16xf32> to vector<1x16xf32>
    %102 = vector.broadcast %101 : vector<1x16xf32> to vector<16x16xf32>
    %103 = arith.mulf %99, %102 : vector<16x16xf32>
    %c0_55 = arith.constant 0 : index
    %c0_56 = arith.constant 0 : index
    %c16 = arith.constant 16 : index
    %104 = vector.load %arg8[%c0_55, %c0_56, %c16] : memref<1x16x64xf32, #tpu.memory_space<vmem>>, vector<1x16x16xf32>
    %105 = vector.shape_cast %104 : vector<1x16x16xf32> to vector<16x16xf32>
    %106 = vector.shape_cast %103 : vector<16x16xf32> to vector<1x16x16xf32>
    tpu.vector_store %arg8[%c0_55, %c0_56, %c16], %106 {strides = array<i32>} : memref<1x16x64xf32, #tpu.memory_space<vmem>>, vector<1x16x16xf32>,
    %c0_57 = arith.constant 0 : index
    %c2 = arith.constant 2 : index
    %c0_58 = arith.constant 0 : index
    %c0_59 = arith.constant 0 : index
    %107 = vector.load %arg2[%c0_57, %c2, %c0_58, %c0_59] : memref<1x4x16x16xf32, #tpu.memory_space<vmem>>, vector<1x1x16x16xf32>
    %108 = vector.shape_cast %107 : vector<1x1x16x16xf32> to vector<16x16xf32>
    %c0_60 = arith.constant 0 : index
    %c2_61 = arith.constant 2 : index
    %c0_62 = arith.constant 0 : index
    %c0_63 = arith.constant 0 : index
    %109 = vector.load %arg3[%c0_60, %c2_61, %c0_62, %c0_63] : memref<1x4x16x16xf32, #tpu.memory_space<vmem>>, vector<1x1x16x16xf32>
    %110 = vector.shape_cast %109 : vector<1x1x16x16xf32> to vector<16x16xf32>
    %cst_64 = arith.constant dense<0.000000e+00> : vector<16x16xf32>
    %111 = tpu.matmul %108, %110, %cst_64 {dimension_numbers = #tpu.dot_dimension_numbers<[1], [1], [0], [0], [0, 0, 1, 0], [], []>} : vector<16x16xf32>, vector<16x16xf32>, vector<16x16xf32> -> vector<16x16xf32>
    %112 = vector.extract_strided_slice %7 {offsets = [2, 0], sizes = [1, 16], strides = [1, 1]} : vector<4x16xf32> to vector<1x16xf32>
    %113 = vector.broadcast %112 : vector<1x16xf32> to vector<16x16xf32>
    %114 = arith.mulf %111, %113 : vector<16x16xf32>
    %cst_65 = arith.constant 0.000000e+00 : f32
    %115 = vector.broadcast %cst_65 : f32 to vector<16x16xf32>
    %116 = arith.select %5, %114, %115 : vector<16x16xi1>, vector<16x16xf32>
    %c0_66 = arith.constant 0 : index
    %c2_67 = arith.constant 2 : index
    %c0_68 = arith.constant 0 : index
    %c0_69 = arith.constant 0 : index
    %117 = vector.load %arg4[%c0_66, %c2_67, %c0_68, %c0_69] : memref<1x4x16x17xf32, #tpu.memory_space<vmem>>, vector<1x1x16x17xf32>
    %118 = vector.shape_cast %117 : vector<1x1x16x17xf32> to vector<16x17xf32>
    %cst_70 = arith.constant dense<0.000000e+00> : vector<16x17xf32>
    %119 = tpu.matmul %116, %118, %cst_70 {dimension_numbers = #tpu.dot_dimension_numbers<[1], [0], [0], [1], [0, 0, 1, 1], [], []>} : vector<16x16xf32>, vector<16x17xf32>, vector<16x17xf32> -> vector<16x17xf32>
    %120 = vector.extract_strided_slice %119 {offsets = [0, 0], sizes = [16, 16], strides = [1, 1]} : vector<16x17xf32> to vector<16x16xf32>
    %121 = vector.extract_strided_slice %119 {offsets = [0, 16], sizes = [16, 1], strides = [1, 1]} : vector<16x17xf32> to vector<16x1xf32>
    %122 = math.absf %121 : vector<16x1xf32>
    %123 = vector.extract_strided_slice %9 {offsets = [2, 0, 0], sizes = [1, 16, 1], strides = [1, 1, 1]} : vector<4x16x1xf32> to vector<1x16x1xf32>
    %124 = vector.shape_cast %123 : vector<1x16x1xf32> to vector<16x1xf32>
    %125 = arith.maximumf %122, %124 : vector<16x1xf32>
    %cst_71 = arith.constant 9.99999997E-7 : f32
    %126 = vector.broadcast %cst_71 : f32 to vector<16x1xf32>
    %127 = arith.addf %125, %126 : vector<16x1xf32>
    %cst_72 = arith.constant 1.000000e+00 : f32
    %128 = vector.broadcast %cst_72 : f32 to vector<16x1xf32>
    %129 = arith.divf %128, %127 : vector<16x1xf32>
    %130 = vector.broadcast %129 : vector<16x1xf32> to vector<16x16xf32>
    %131 = arith.mulf %120, %130 : vector<16x16xf32>
    %cst_73 = arith.constant dense<0.000000e+00> : vector<16xf32>
    %132 = vector.multi_reduction <add>, %131, %cst_73 [1] : vector<16x16xf32> to vector<16xf32>
    %133 = vector.shape_cast %132 : vector<16xf32> to vector<16x1xf32>
    %cst_74 = arith.constant 1.600000e+01 : f32
    %134 = vector.broadcast %cst_74 : f32 to vector<16x1xf32>
    %135 = arith.divf %133, %134 : vector<16x1xf32>
    %136 = vector.broadcast %135 : vector<16x1xf32> to vector<16x16xf32>
    %137 = arith.subf %131, %136 : vector<16x16xf32>
    %138 = arith.mulf %137, %137 : vector<16x16xf32>
    %cst_75 = arith.constant dense<0.000000e+00> : vector<16xf32>
    %139 = vector.multi_reduction <add>, %138, %cst_75 [1] : vector<16x16xf32> to vector<16xf32>
    %140 = vector.shape_cast %139 : vector<16xf32> to vector<16x1xf32>
    %cst_76 = arith.constant 1.600000e+01 : f32
    %141 = vector.broadcast %cst_76 : f32 to vector<16x1xf32>
    %142 = arith.divf %140, %141 : vector<16x1xf32>
    %cst_77 = arith.constant 9.99999974E-6 : f32
    %143 = vector.broadcast %cst_77 : f32 to vector<16x1xf32>
    %144 = arith.addf %142, %143 : vector<16x1xf32>
    %145 = math.rsqrt %144 : vector<16x1xf32>
    %146 = vector.broadcast %145 : vector<16x1xf32> to vector<16x16xf32>
    %147 = arith.mulf %137, %146 : vector<16x16xf32>
    %148 = vector.extract_strided_slice %10 {offsets = [2, 0, 0], sizes = [1, 1, 16], strides = [1, 1, 1]} : vector<4x1x16xf32> to vector<1x1x16xf32>
    %149 = vector.shape_cast %148 : vector<1x1x16xf32> to vector<1x16xf32>
    %150 = vector.broadcast %149 : vector<1x16xf32> to vector<16x16xf32>
    %151 = arith.mulf %147, %150 : vector<16x16xf32>
    %c0_78 = arith.constant 0 : index
    %c0_79 = arith.constant 0 : index
    %c32 = arith.constant 32 : index
    %152 = vector.load %arg8[%c0_78, %c0_79, %c32] : memref<1x16x64xf32, #tpu.memory_space<vmem>>, vector<1x16x16xf32>
    %153 = vector.shape_cast %152 : vector<1x16x16xf32> to vector<16x16xf32>
    %154 = vector.shape_cast %151 : vector<16x16xf32> to vector<1x16x16xf32>
    tpu.vector_store %arg8[%c0_78, %c0_79, %c32], %154 {strides = array<i32>} : memref<1x16x64xf32, #tpu.memory_space<vmem>>, vector<1x16x16xf32>,
    %c0_80 = arith.constant 0 : index
    %c3 = arith.constant 3 : index
    %c0_81 = arith.constant 0 : index
    %c0_82 = arith.constant 0 : index
    %155 = vector.load %arg2[%c0_80, %c3, %c0_81, %c0_82] : memref<1x4x16x16xf32, #tpu.memory_space<vmem>>, vector<1x1x16x16xf32>
    %156 = vector.shape_cast %155 : vector<1x1x16x16xf32> to vector<16x16xf32>
    %c0_83 = arith.constant 0 : index
    %c3_84 = arith.constant 3 : index
    %c0_85 = arith.constant 0 : index
    %c0_86 = arith.constant 0 : index
    %157 = vector.load %arg3[%c0_83, %c3_84, %c0_85, %c0_86] : memref<1x4x16x16xf32, #tpu.memory_space<vmem>>, vector<1x1x16x16xf32>
    %158 = vector.shape_cast %157 : vector<1x1x16x16xf32> to vector<16x16xf32>
    %cst_87 = arith.constant dense<0.000000e+00> : vector<16x16xf32>
    %159 = tpu.matmul %156, %158, %cst_87 {dimension_numbers = #tpu.dot_dimension_numbers<[1], [1], [0], [0], [0, 0, 1, 0], [], []>} : vector<16x16xf32>, vector<16x16xf32>, vector<16x16xf32> -> vector<16x16xf32>
    %160 = vector.extract_strided_slice %7 {offsets = [3, 0], sizes = [1, 16], strides = [1, 1]} : vector<4x16xf32> to vector<1x16xf32>
    %161 = vector.broadcast %160 : vector<1x16xf32> to vector<16x16xf32>
    %162 = arith.mulf %159, %161 : vector<16x16xf32>
    %cst_88 = arith.constant 0.000000e+00 : f32
    %163 = vector.broadcast %cst_88 : f32 to vector<16x16xf32>
    %164 = arith.select %5, %162, %163 : vector<16x16xi1>, vector<16x16xf32>
    %c0_89 = arith.constant 0 : index
    %c3_90 = arith.constant 3 : index
    %c0_91 = arith.constant 0 : index
    %c0_92 = arith.constant 0 : index
    %165 = vector.load %arg4[%c0_89, %c3_90, %c0_91, %c0_92] : memref<1x4x16x17xf32, #tpu.memory_space<vmem>>, vector<1x1x16x17xf32>
    %166 = vector.shape_cast %165 : vector<1x1x16x17xf32> to vector<16x17xf32>
    %cst_93 = arith.constant dense<0.000000e+00> : vector<16x17xf32>
    %167 = tpu.matmul %164, %166, %cst_93 {dimension_numbers = #tpu.dot_dimension_numbers<[1], [0], [0], [1], [0, 0, 1, 1], [], []>} : vector<16x16xf32>, vector<16x17xf32>, vector<16x17xf32> -> vector<16x17xf32>
    %168 = vector.extract_strided_slice %167 {offsets = [0, 0], sizes = [16, 16], strides = [1, 1]} : vector<16x17xf32> to vector<16x16xf32>
    %169 = vector.extract_strided_slice %167 {offsets = [0, 16], sizes = [16, 1], strides = [1, 1]} : vector<16x17xf32> to vector<16x1xf32>
    %170 = math.absf %169 : vector<16x1xf32>
    %171 = vector.extract_strided_slice %9 {offsets = [3, 0, 0], sizes = [1, 16, 1], strides = [1, 1, 1]} : vector<4x16x1xf32> to vector<1x16x1xf32>
    %172 = vector.shape_cast %171 : vector<1x16x1xf32> to vector<16x1xf32>
    %173 = arith.maximumf %170, %172 : vector<16x1xf32>
    %cst_94 = arith.constant 9.99999997E-7 : f32
    %174 = vector.broadcast %cst_94 : f32 to vector<16x1xf32>
    %175 = arith.addf %173, %174 : vector<16x1xf32>
    %cst_95 = arith.constant 1.000000e+00 : f32
    %176 = vector.broadcast %cst_95 : f32 to vector<16x1xf32>
    %177 = arith.divf %176, %175 : vector<16x1xf32>
    %178 = vector.broadcast %177 : vector<16x1xf32> to vector<16x16xf32>
    %179 = arith.mulf %168, %178 : vector<16x16xf32>
    %cst_96 = arith.constant dense<0.000000e+00> : vector<16xf32>
    %180 = vector.multi_reduction <add>, %179, %cst_96 [1] : vector<16x16xf32> to vector<16xf32>
    %181 = vector.shape_cast %180 : vector<16xf32> to vector<16x1xf32>
    %cst_97 = arith.constant 1.600000e+01 : f32
    %182 = vector.broadcast %cst_97 : f32 to vector<16x1xf32>
    %183 = arith.divf %181, %182 : vector<16x1xf32>
    %184 = vector.broadcast %183 : vector<16x1xf32> to vector<16x16xf32>
    %185 = arith.subf %179, %184 : vector<16x16xf32>
    %186 = arith.mulf %185, %185 : vector<16x16xf32>
    %cst_98 = arith.constant dense<0.000000e+00> : vector<16xf32>
    %187 = vector.multi_reduction <add>, %186, %cst_98 [1] : vector<16x16xf32> to vector<16xf32>
    %188 = vector.shape_cast %187 : vector<16xf32> to vector<16x1xf32>
    %cst_99 = arith.constant 1.600000e+01 : f32
    %189 = vector.broadcast %cst_99 : f32 to vector<16x1xf32>
    %190 = arith.divf %188, %189 : vector<16x1xf32>
    %cst_100 = arith.constant 9.99999974E-6 : f32
    %191 = vector.broadcast %cst_100 : f32 to vector<16x1xf32>
    %192 = arith.addf %190, %191 : vector<16x1xf32>
    %193 = math.rsqrt %192 : vector<16x1xf32>
    %194 = vector.broadcast %193 : vector<16x1xf32> to vector<16x16xf32>
    %195 = arith.mulf %185, %194 : vector<16x16xf32>
    %196 = vector.extract_strided_slice %10 {offsets = [3, 0, 0], sizes = [1, 1, 16], strides = [1, 1, 1]} : vector<4x1x16xf32> to vector<1x1x16xf32>
    %197 = vector.shape_cast %196 : vector<1x1x16xf32> to vector<1x16xf32>
    %198 = vector.broadcast %197 : vector<1x16xf32> to vector<16x16xf32>
    %199 = arith.mulf %195, %198 : vector<16x16xf32>
    %c0_101 = arith.constant 0 : index
    %c0_102 = arith.constant 0 : index
    %c48 = arith.constant 48 : index
    %200 = vector.load %arg8[%c0_101, %c0_102, %c48] : memref<1x16x64xf32, #tpu.memory_space<vmem>>, vector<1x16x16xf32>
    %201 = vector.shape_cast %200 : vector<1x16x16xf32> to vector<16x16xf32>
    %202 = vector.shape_cast %199 : vector<16x16xf32> to vector<1x16x16xf32>
    tpu.vector_store %arg8[%c0_101, %c0_102, %c48], %202 {strides = array<i32>} : memref<1x16x64xf32, #tpu.memory_space<vmem>>, vector<1x16x16xf32>,
    return
  }
  func.func @transform_0(%arg0: i32, %arg1: i32) -> (i32, i32, i32, i32) {
    %c0_i32 = arith.constant 0 : i32
    %c0_i32_0 = arith.constant 0 : i32
    %c0_i32_1 = arith.constant 0 : i32
    return %arg0, %c0_i32, %arg1, %c0_i32_0 : i32, i32, i32, i32
  }
  func.func @transform_1(%arg0: i32, %arg1: i32) -> (i32, i32, i32, i32) {
    %c0_i32 = arith.constant 0 : i32
    %c0_i32_0 = arith.constant 0 : i32
    %c0_i32_1 = arith.constant 0 : i32
    %c0_i32_2 = arith.constant 0 : i32
    return %arg0, %c0_i32, %c0_i32_0, %c0_i32_1 : i32, i32, i32, i32
  }
  func.func @transform_2(%arg0: i32, %arg1: i32) -> (i32, i32, i32, i32) {
    %c0_i32 = arith.constant 0 : i32
    %c0_i32_0 = arith.constant 0 : i32
    %c0_i32_1 = arith.constant 0 : i32
    %c0_i32_2 = arith.constant 0 : i32
    return %arg0, %c0_i32, %c0_i32_0, %c0_i32_1 : i32, i32, i32, i32
  }
  func.func @transform_3(%arg0: i32, %arg1: i32) -> (i32, i32, i32, i32) {
    %c0_i32 = arith.constant 0 : i32
    %c0_i32_0 = arith.constant 0 : i32
    %c0_i32_1 = arith.constant 0 : i32
    return %arg0, %arg1, %c0_i32, %c0_i32_0 : i32, i32, i32, i32
  }
  func.func @transform_4(%arg0: i32, %arg1: i32) -> (i32, i32, i32, i32) {
    %c0_i32 = arith.constant 0 : i32
    %c0_i32_0 = arith.constant 0 : i32
    %c0_i32_1 = arith.constant 0 : i32
    return %arg0, %c0_i32, %arg1, %c0_i32_0 : i32, i32, i32, i32
  }
  func.func @transform_5(%arg0: i32, %arg1: i32) -> (i32, i32, i32) {
    %c0_i32 = arith.constant 0 : i32
    %c0_i32_0 = arith.constant 0 : i32
    %c0_i32_1 = arith.constant 0 : i32
    %c0_i32_2 = arith.constant 0 : i32
    return %c0_i32, %c0_i32_0, %c0_i32_1 : i32, i32, i32
  }
  func.func @transform_6(%arg0: i32, %arg1: i32) -> (i32, i32, i32) {
    %c0_i32 = arith.constant 0 : i32
    %c0_i32_0 = arith.constant 0 : i32
    return %arg0, %arg1, %c0_i32 : i32, i32, i32
  }
}

</mosaic_0001>

<llo_original>
// kernel: mlstm_cell_forward.1
$region0: #{mlstm_cell_forward.1}
  #allocation0 [shape = 'u32[]', space=smem, size = 0x4, offset = 0x4, fixed_abs, tag = 'smem constant byte address 0x4 - core index']
  #allocation1 [shape = 'u32[144,128]{1,0:T(1,128)}', space=vmem, size = 0x12000, scoped, tag = 'internal scratch']
  %s0 = inlined_call_operand.vmem [shape: f32[2,4,16,16], index: 0, kind: input, shape index: {}]
  %s1 = inlined_call_operand.vmem [shape: f32[2,4,16,16], index: 1, kind: input, shape index: {}]
  %s2 = inlined_call_operand.vmem [shape: f32[2,4,16,17], index: 2, kind: input, shape index: {}]
  %s3 = inlined_call_operand.vmem [shape: f32[2,1,4,16], index: 3, kind: input, shape index: {}]
  %s4 = inlined_call_operand.vmem [shape: f32[2,4,16,1], index: 4, kind: input, shape index: {}]
  %s5 = inlined_call_operand.vmem [shape: f32[4,1,16], index: 5, kind: input, shape index: {}]
  %s6 = inlined_call_operand.hbm [shape: f32[2,16,64], index: 6, kind: output, shape index: {}]
  %s7 = sld [smem:[#allocation0]]
  $region57: #{mlstm_cell_forward.1} parent=0
    _
  %s9 = ssub.s32 1, %s7
  %s10 = scalar_select 0, %s9, %s7
  $region1: #{mlstm_cell_forward.1} parent=0
    #allocation2 [shape = 'u8[16384]{0}', space=vmem, size = 0x4000, scoped, tag = 'output window, operand 0']
    #allocation3 [shape = 's32[2]{0}', space=sflag, size = 0x8, scoped, tag = 'scoped memory for mlstm_cell_forward.1']
    %11 = vsyncpa [#allocation3], 0
    %s12 = scalar_lea.sflag [#allocation3], 1
    %13 = vsyncpa %s12, 0
    loop: start=0, step=1, limit=4
    $region2: #{mlstm_cell_forward.1} parent=1 // loop_pre_header
      _
    $region3: #{mlstm_cell_forward.1} parent=1 // loop_header
      %s15 = sphi 0, %s19
      %p16 = scmp.ge.s32.totalorder %s15, 4
      %s22 = sphi 0, %s34
      %s23 = sphi 0, %s30
      %s24 = sphi 0, %s22
      %s25 = sphi 0, %s23
      %s26 = sphi 0, %s24
      %s27 = sphi 0, %s25
      %s39 = sphi 0, %s41
      %s42 = sphi 0, %s39
      %s43 = sphi 0, %s42
      %s59 = sphi 0, %s43
      %s65 = sphi 0, %s67
      %s68 = sphi 0, %s65
      %s69 = sphi 0, %s68
      %s85 = sphi 0, %s69
      %s91 = sphi 0, %s93
      %s94 = sphi 0, %s91
      %s95 = sphi 0, %s94
      %s111 = sphi 0, %s95
      %s119 = sphi 0, %s121
      %s122 = sphi 0, %s119
      %s123 = sphi 0, %s122
      %s139 = sphi 0, %s123
      %s147 = sphi 0, %s149
      %s150 = sphi 0, %s147
      %s151 = sphi 0, %s150
      %s167 = sphi 0, %s151
      %s171 = sphi 0, %s171
      %s173 = sphi 0, %s171
      %s174 = sphi 0, %s173
      %s188 = sphi 0, %s174
      %s196 = sphi 0, %s198
      %s199 = sphi 0, %s196
      %s200 = sphi 0, %s199
      %s216 = sphi 0, %s200
    $region4: #{mlstm_cell_forward.1} parent=1 // loop_header_branch
      %18 = sbr.rel (%p16) target = $region8
    $region5: #{mlstm_cell_forward.1} parent=1 // loop_body
      %s20 = ssub.s32 %s15, 1
      %s21 = ssub.s32 %s15, 2
      %s28 = sadd.s32 1, %s23
      %p29 = scmp.ge.s32.totalorder %s28, 1
      %s30 = scalar_select %p29, 0, %s28
      %s31 = sadd.s32 1, %s22
      %s32 = scalar_select %p29, %s31, %s22
      %p33 = scmp.ge.s32.totalorder %s32, 2
      %s34 = scalar_select %p33, 0, %s32
      %s35 = ssub.s32 %s22, %s34
      %s36 = ssub.s32 %s23, %s30
      %s37 = sor.u32 %s35, %s36
      %p38 = scmp.eq.s32.totalorder %s37, 0
      %s40 = sadd.s32 %s39, 1
      %s41 = scalar_select %p38, %s39, %s40
      %p44 = pneg %p38
      %p45 = scmp.eq.s32.totalorder %s15, 1
      %p46 = por %p44, %p45
      %p47 = scmp.ne.s32.totalorder %s39, %s42
      %p48 = scmp.eq.s32.totalorder %s15, 0
      %p49 = por %p47, %p48
      %p50 = scmp.ne.s32.totalorder %s39, %s42
      %p51 = scmp.eq.s32.totalorder %s20, 1
      %p52 = por %p50, %p51
      %p53 = scmp.ne.s32.totalorder %s42, %s43
      %p54 = scmp.eq.s32.totalorder %s20, 0
      %p55 = por %p53, %p54
      %p56 = scmp.ne.s32.totalorder %s42, %s43
      %p57 = scmp.eq.s32.totalorder %s21, 1
      %p58 = por %p56, %p57
      %p60 = scmp.ne.s32.totalorder %s43, %s59
      %p61 = scmp.eq.s32.totalorder %s21, 0
      %p62 = por %p60, %p61
      %s63 = ssub.s32 %s22, %s34
      %p64 = scmp.eq.s32.totalorder %s63, 0
      %s66 = sadd.s32 %s65, 1
      %s67 = scalar_select %p64, %s65, %s66
      %p70 = pneg %p64
      %p71 = scmp.eq.s32.totalorder %s15, 1
      %p72 = por %p70, %p71
      %p73 = scmp.ne.s32.totalorder %s65, %s68
      %p74 = scmp.eq.s32.totalorder %s15, 0
      %p75 = por %p73, %p74
      %p76 = scmp.ne.s32.totalorder %s65, %s68
      %p77 = scmp.eq.s32.totalorder %s20, 1
      %p78 = por %p76, %p77
      %p79 = scmp.ne.s32.totalorder %s68, %s69
      %p80 = scmp.eq.s32.totalorder %s20, 0
      %p81 = por %p79, %p80
      %p82 = scmp.ne.s32.totalorder %s68, %s69
      %p83 = scmp.eq.s32.totalorder %s21, 1
      %p84 = por %p82, %p83
      %p86 = scmp.ne.s32.totalorder %s69, %s85
      %p87 = scmp.eq.s32.totalorder %s21, 0
      %p88 = por %p86, %p87
      %s89 = ssub.s32 %s22, %s34
      %p90 = scmp.eq.s32.totalorder %s89, 0
      %s92 = sadd.s32 %s91, 1
      %s93 = scalar_select %p90, %s91, %s92
      %p96 = pneg %p90
      %p97 = scmp.eq.s32.totalorder %s15, 1
      %p98 = por %p96, %p97
      %p99 = scmp.ne.s32.totalorder %s91, %s94
      %p100 = scmp.eq.s32.totalorder %s15, 0
      %p101 = por %p99, %p100
      %p102 = scmp.ne.s32.totalorder %s91, %s94
      %p103 = scmp.eq.s32.totalorder %s20, 1
      %p104 = por %p102, %p103
      %p105 = scmp.ne.s32.totalorder %s94, %s95
      %p106 = scmp.eq.s32.totalorder %s20, 0
      %p107 = por %p105, %p106
      %p108 = scmp.ne.s32.totalorder %s94, %s95
      %p109 = scmp.eq.s32.totalorder %s21, 1
      %p110 = por %p108, %p109
      %p112 = scmp.ne.s32.totalorder %s95, %s111
      %p113 = scmp.eq.s32.totalorder %s21, 0
      %p114 = por %p112, %p113
      %s115 = ssub.s32 %s22, %s34
      %s116 = ssub.s32 %s23, %s30
      %s117 = sor.u32 %s115, %s116
      %p118 = scmp.eq.s32.totalorder %s117, 0
      %s120 = sadd.s32 %s119, 1
      %s121 = scalar_select %p118, %s119, %s120
      %p124 = pneg %p118
      %p125 = scmp.eq.s32.totalorder %s15, 1
      %p126 = por %p124, %p125
      %p127 = scmp.ne.s32.totalorder %s119, %s122
      %p128 = scmp.eq.s32.totalorder %s15, 0
      %p129 = por %p127, %p128
      %p130 = scmp.ne.s32.totalorder %s119, %s122
      %p131 = scmp.eq.s32.totalorder %s20, 1
      %p132 = por %p130, %p131
      %p133 = scmp.ne.s32.totalorder %s122, %s123
      %p134 = scmp.eq.s32.totalorder %s20, 0
      %p135 = por %p133, %p134
      %p136 = scmp.ne.s32.totalorder %s122, %s123
      %p137 = scmp.eq.s32.totalorder %s21, 1
      %p138 = por %p136, %p137
      %p140 = scmp.ne.s32.totalorder %s123, %s139
      %p141 = scmp.eq.s32.totalorder %s21, 0
      %p142 = por %p140, %p141
      %s143 = ssub.s32 %s22, %s34
      %s144 = ssub.s32 %s23, %s30
      %s145 = sor.u32 %s143, %s144
      %p146 = scmp.eq.s32.totalorder %s145, 0
      %s148 = sadd.s32 %s147, 1
      %s149 = scalar_select %p146, %s147, %s148
      %p152 = pneg %p146
      %p153 = scmp.eq.s32.totalorder %s15, 1
      %p154 = por %p152, %p153
      %p155 = scmp.ne.s32.totalorder %s147, %s150
      %p156 = scmp.eq.s32.totalorder %s15, 0
      %p157 = por %p155, %p156
      %p158 = scmp.ne.s32.totalorder %s147, %s150
      %p159 = scmp.eq.s32.totalorder %s20, 1
      %p160 = por %p158, %p159
      %p161 = scmp.ne.s32.totalorder %s150, %s151
      %p162 = scmp.eq.s32.totalorder %s20, 0
      %p163 = por %p161, %p162
      %p164 = scmp.ne.s32.totalorder %s150, %s151
      %p165 = scmp.eq.s32.totalorder %s21, 1
      %p166 = por %p164, %p165
      %p168 = scmp.ne.s32.totalorder %s151, %s167
      %p169 = scmp.eq.s32.totalorder %s21, 0
      %p170 = por %p168, %p169
      %s172 = sadd.s32 %s171, 1
      %p175 = scmp.eq.s32.totalorder %s15, 1
      %p176 = scmp.ne.s32.totalorder %s171, %s173
      %p177 = scmp.eq.s32.totalorder %s15, 0
      %p178 = por %p176, %p177
      %p179 = scmp.ne.s32.totalorder %s171, %s173
      %p180 = scmp.eq.s32.totalorder %s20, 1
      %p181 = por %p179, %p180
      %p182 = scmp.ne.s32.totalorder %s173, %s174
      %p183 = scmp.eq.s32.totalorder %s20, 0
      %p184 = por %p182, %p183
      %p185 = scmp.ne.s32.totalorder %s173, %s174
      %p186 = scmp.eq.s32.totalorder %s21, 1
      %p187 = por %p185, %p186
      %p189 = scmp.ne.s32.totalorder %s174, %s188
      %p190 = scmp.eq.s32.totalorder %s21, 0
      %p191 = por %p189, %p190
      %s192 = ssub.s32 %s22, %s34
      %s193 = ssub.s32 %s23, %s30
      %s194 = sor.u32 %s192, %s193
      %p195 = scmp.eq.s32.totalorder %s194, 0
      %s197 = sadd.s32 %s196, 1
      %s198 = scalar_select %p195, %s196, %s197
      %p201 = pneg %p195
      %p202 = scmp.eq.s32.totalorder %s15, 1
      %p203 = por %p201, %p202
      %p204 = scmp.ne.s32.totalorder %s196, %s199
      %p205 = scmp.eq.s32.totalorder %s15, 0
      %p206 = por %p204, %p205
      %p207 = scmp.ne.s32.totalorder %s196, %s199
      %p208 = scmp.eq.s32.totalorder %s20, 1
      %p209 = por %p207, %p208
      %p210 = scmp.ne.s32.totalorder %s199, %s200
      %p211 = scmp.eq.s32.totalorder %s20, 0
      %p212 = por %p210, %p211
      %p213 = scmp.ne.s32.totalorder %s199, %s200
      %p214 = scmp.eq.s32.totalorder %s21, 1
      %p215 = por %p213, %p214
      %p217 = scmp.ne.s32.totalorder %s200, %s216
      %p218 = scmp.eq.s32.totalorder %s21, 0
      %p219 = por %p217, %p218
      %p220 = scmp.le.s32.totalorder 1, %s15
      %p221 = scmp.lt.s32.totalorder %s15, 3
      %p222 = pnand %p220, %p221
      %p223 = pneg %p222
      // Predicated region
      $region9: #{mlstm_cell_forward.1} parent=5 // pred_check
        _
      $region10: #{mlstm_cell_forward.1} parent=5 // pred_check_branch
        %225 = sbr.rel (%p222) target = $region12
      $region11: #{mlstm_cell_forward.1} parent=5 // pred_region
        %s226 = ssub.s32 %s15, 1
        // Predicated region
        $region13: #{mlstm_cell_forward.1} parent=11 // pred_check
          %p227 = pneg %p184
        $region14: #{mlstm_cell_forward.1} parent=11 // pred_check_branch
          %229 = sbr.rel (%p227) target = $region16
        $region15: #{mlstm_cell_forward.1} parent=11 // pred_region
          _
        $region16: #{mlstm_cell_forward.1} parent=11 // pred_fallthru
          _
      $region12: #{mlstm_cell_forward.1} parent=5 // pred_fallthru
        _
      %p230 = scmp.lt.s32.totalorder %s15, 2
      // Predicated region
      $region17: #{mlstm_cell_forward.1} parent=5 // pred_check
        %p231 = pneg %p230
      $region18: #{mlstm_cell_forward.1} parent=5 // pred_check_branch
        %233 = sbr.rel (%p231) target = $region20
      $region19: #{mlstm_cell_forward.1} parent=5 // pred_region
        // Predicated region
        $region21: #{mlstm_cell_forward.1} parent=19 // pred_check
          %p234 = pneg %p49
        $region22: #{mlstm_cell_forward.1} parent=19 // pred_check_branch
          %236 = sbr.rel (%p234) target = $region24
        $region23: #{mlstm_cell_forward.1} parent=19 // pred_region
          %s237 = smul.u32 2, %s23
          %p238 = scmp.lt.s32.totalorder %s22, 1
          %s239 = scalar_select %p238, %s22, 1
          %p240 = scmp.lt.s32.totalorder %s237, 1
          %s241 = scalar_select %p240, %s237, 1
          %s242 = smul.addr %s239, 8
          %s243 = sadd.s32 %s241, %s242
          %s244 = smul.addr %s243, 8
          %s245 = scalar_lea.vmem %s0, %s244
          %s246 = smul.u32 2, %s23
        $region24: #{mlstm_cell_forward.1} parent=19 // pred_fallthru
          _
        // Predicated region
        $region25: #{mlstm_cell_forward.1} parent=19 // pred_check
          %p247 = pneg %p75
        $region26: #{mlstm_cell_forward.1} parent=19 // pred_check_branch
          %249 = sbr.rel (%p247) target = $region28
        $region27: #{mlstm_cell_forward.1} parent=19 // pred_region
          %p250 = scmp.lt.s32.totalorder %s22, 1
          %s251 = scalar_select %p250, %s22, 1
          %s252 = smul.addr %s251, 8
          %s253 = smul.addr %s252, 8
          %s254 = scalar_lea.vmem %s1, %s253
        $region28: #{mlstm_cell_forward.1} parent=19 // pred_fallthru
          _
        // Predicated region
        $region29: #{mlstm_cell_forward.1} parent=19 // pred_check
          %p255 = pneg %p101
        $region30: #{mlstm_cell_forward.1} parent=19 // pred_check_branch
          %257 = sbr.rel (%p255) target = $region32
        $region31: #{mlstm_cell_forward.1} parent=19 // pred_region
          %p258 = scmp.lt.s32.totalorder %s22, 1
          %s259 = scalar_select %p258, %s22, 1
          %s260 = smul.addr %s259, 8
          %s261 = smul.addr %s260, 8
          %s262 = scalar_lea.vmem %s2, %s261
        $region32: #{mlstm_cell_forward.1} parent=19 // pred_fallthru
          _
        // Predicated region
        $region33: #{mlstm_cell_forward.1} parent=19 // pred_check
          %p263 = pneg %p129
        $region34: #{mlstm_cell_forward.1} parent=19 // pred_check_branch
          %265 = sbr.rel (%p263) target = $region36
        $region35: #{mlstm_cell_forward.1} parent=19 // pred_region
          %p266 = scmp.lt.s32.totalorder %s22, 1
          %s267 = scalar_select %p266, %s22, 1
          %p268 = scmp.lt.s32.totalorder %s23, 0
          %s269 = scalar_select %p268, %s23, 0
          %s270 = sadd.s32 %s269, %s267
          %s271 = smul.addr %s270, 4
          %s272 = scalar_lea.vmem %s3, %s271
        $region36: #{mlstm_cell_forward.1} parent=19 // pred_fallthru
          _
        // Predicated region
        $region37: #{mlstm_cell_forward.1} parent=19 // pred_check
          %p273 = pneg %p157
        $region38: #{mlstm_cell_forward.1} parent=19 // pred_check_branch
          %275 = sbr.rel (%p273) target = $region40
        $region39: #{mlstm_cell_forward.1} parent=19 // pred_region
          %s276 = smul.u32 2, %s23
          %p277 = scmp.lt.s32.totalorder %s22, 1
          %s278 = scalar_select %p277, %s22, 1
          %p279 = scmp.lt.s32.totalorder %s276, 1
          %s280 = scalar_select %p279, %s276, 1
          %s281 = smul.addr %s278, 8
          %s282 = sadd.s32 %s280, %s281
          %s283 = smul.addr %s282, 8
          %s284 = scalar_lea.vmem %s4, %s283
          %s285 = smul.u32 2, %s23
        $region40: #{mlstm_cell_forward.1} parent=19 // pred_fallthru
          _
      $region20: #{mlstm_cell_forward.1} parent=5 // pred_fallthru
        _
      %p286 = scmp.le.s32.totalorder 1, %s15
      %p287 = scmp.lt.s32.totalorder %s15, 3
      %p288 = pnand %p286, %p287
      %p289 = pneg %p288
      // Predicated region
      $region41: #{mlstm_cell_forward.1} parent=5 // pred_check
        _
      $region42: #{mlstm_cell_forward.1} parent=5 // pred_check_branch
        %291 = sbr.rel (%p288) target = $region44
      $region43: #{mlstm_cell_forward.1} parent=5 // pred_region
        %s292 = ssub.s32 %s15, 1
        %s293 = smul.u32 2, %s25
        %p294 = scmp.lt.s32.totalorder %s24, 1
        %s295 = scalar_select %p294, %s24, 1
        %p296 = scmp.lt.s32.totalorder %s293, 1
        %s297 = scalar_select %p296, %s293, 1
        %s298 = smul.addr %s295, 8
        %s299 = sadd.s32 %s297, %s298
        %s300 = smul.addr %s299, 8
        %s301 = scalar_lea.vmem %s0, %s300
        %p302 = pneg %p55
        %p303 = pneg %p52
        %p304 = scmp.lt.s32.totalorder %s24, 1
        %s305 = scalar_select %p304, %s24, 1
        %s306 = smul.addr %s305, 8
        %s307 = smul.addr %s306, 8
        %s308 = scalar_lea.vmem %s1, %s307
        %p309 = pneg %p81
        %p310 = pneg %p78
        %p311 = scmp.lt.s32.totalorder %s24, 1
        %s312 = scalar_select %p311, %s24, 1
        %s313 = smul.addr %s312, 8
        %s314 = smul.addr %s313, 8
        %s315 = scalar_lea.vmem %s2, %s314
        %p316 = pneg %p107
        %p317 = pneg %p104
        %p318 = scmp.lt.s32.totalorder %s24, 1
        %s319 = scalar_select %p318, %s24, 1
        %p320 = scmp.lt.s32.totalorder %s25, 0
        %s321 = scalar_select %p320, %s25, 0
        %s322 = sadd.s32 %s321, %s319
        %s323 = smul.addr %s322, 4
        %s324 = scalar_lea.vmem %s3, %s323
        %p325 = pneg %p135
        %p326 = pneg %p132
        %s327 = smul.u32 2, %s25
        %p328 = scmp.lt.s32.totalorder %s24, 1
        %s329 = scalar_select %p328, %s24, 1
        %p330 = scmp.lt.s32.totalorder %s327, 1
        %s331 = scalar_select %p330, %s327, 1
        %s332 = smul.addr %s329, 8
        %s333 = sadd.s32 %s331, %s332
        %s334 = smul.addr %s333, 8
        %s335 = scalar_lea.vmem %s4, %s334
        %p336 = pneg %p163
        %p337 = pneg %p160
        %p338 = pneg %p184
        %p339 = pneg %p181
        %p340 = pneg %p212
        %p341 = pneg %p209
        %s342 = sand.u32 %s199, 1
        %s343 = scalar_lea.sflag [#allocation3], %s342
        %s344 = sand.u32 %s199, 1
        %s345 = smul.addr %s344, 16
        %s346 = scalar_lea.vmem [#allocation2], %s345
        %s347 = smul.u32 2, %s25
        %p348 = scmp.lt.s32.totalorder %s24, 1
        %s349 = scalar_select %p348, %s24, 1
        %p350 = scmp.lt.s32.totalorder %s347, 1
        %s351 = scalar_select %p350, %s347, 1
        %s352 = smul.addr %s349, 8
        %s353 = sadd.s32 %s351, %s352
        %s354 = smul.addr %s353, 8
        %s355 = scalar_lea.vmem %s0, %s354
        %s356 = smul.u32 2, %s25
        %p357 = scmp.lt.s32.totalorder %s24, 1
        %s358 = scalar_select %p357, %s24, 1
        %s359 = smul.addr %s358, 8
        %s360 = smul.addr %s359, 8
        %s361 = scalar_lea.vmem %s1, %s360
        %p362 = scmp.lt.s32.totalorder %s24, 1
        %s363 = scalar_select %p362, %s24, 1
        %s364 = smul.addr %s363, 8
        %s365 = smul.addr %s364, 8
        %s366 = scalar_lea.vmem %s2, %s365
        %p367 = scmp.lt.s32.totalorder %s24, 1
        %s368 = scalar_select %p367, %s24, 1
        %p369 = scmp.lt.s32.totalorder %s25, 0
        %s370 = scalar_select %p369, %s25, 0
        %s371 = sadd.s32 %s370, %s368
        %s372 = smul.addr %s371, 4
        %s373 = scalar_lea.vmem %s3, %s372
        %s374 = smul.u32 2, %s25
        %p375 = scmp.lt.s32.totalorder %s24, 1
        %s376 = scalar_select %p375, %s24, 1
        %p377 = scmp.lt.s32.totalorder %s374, 1
        %s378 = scalar_select %p377, %s374, 1
        %s379 = smul.addr %s376, 8
        %s380 = sadd.s32 %s378, %s379
        %s381 = smul.addr %s380, 8
        %s382 = scalar_lea.vmem %s4, %s381
        %s383 = smul.u32 2, %s25
        %s384 = smul.u32 2, %s25
        %s385 = smul.u32 %s25, 16
        %v386 = vlaneseq
        %v387 = vshrl.u32 %v386, 7
        %v388 = vadd.s32 %v387, 8
        %v389 = vlaneseq
        %v390 = vand.u32 %v389, 127
        %v391 = vstv %s385
        %v392 = vadd.s32 %v387, %v391
        %v393 = vadd.s32 %v388, %v391
        %vm394 = vcmp.ge.s32.totalorder %v392, %v390
        %vm395 = vcmp.ge.s32.totalorder %v393, %v390
        %v396 = vld [vmem:[%s373] sm:$0xf]
        %v397 = vld [vmem:[%s382] sm:$0xff]
        %v398 = vld [vmem:[%s382 + $0x8] sm:$0xff]
        %v399 = vld [vmem:[%s382 + $0x10] sm:$0xff]
        %v400 = vld [vmem:[%s382 + $0x18] sm:$0xff]
        %v401 = vld [vmem:[%s382 + $0x20] sm:$0xff]
        %v402 = vld [vmem:[%s382 + $0x28] sm:$0xff]
        %v403 = vld [vmem:[%s382 + $0x30] sm:$0xff]
        %v404 = vld [vmem:[%s382 + $0x38] sm:$0xff]
        %v405 = vld [vmem:[%s5] sm:$0x1]
        %v406 = vld [vmem:[%s5 + $0x1] sm:$0x1]
        %v407 = vld [vmem:[%s5 + $0x2] sm:$0x1]
        %v408 = vld [vmem:[%s5 + $0x3] sm:$0x1]
        %v409 = vld [vmem:[%s355] sm:$0xff]
        %v410 = vld [vmem:[%s355 + $0x8] sm:$0xff]
        %v411 = vld [vmem:[%s361] sm:$0xff]
        %v412 = vld [vmem:[%s361 + $0x8] sm:$0xff]
        %vm413 = vcmask 130048
        %v415 = vsel %vm413, %v409, 0
        %v418 = vsel %vm413, %v410, 0
        %v421 = vsel %vm413, %v411, 0
        %v424 = vsel %vm413, %v412, 0
        %426 = vmatprep.subr.mxu0 0.0
        %427 = vmatpush1.xpose.msra.mxu0 %v421
        %428 = vmatprep.subr.mxu0 0.0
        %429 = vmatpush1.xpose.msra.mxu0 %v424
        %430 = vmatprep.subr.mxu0 0.0
        %431 = vmatpush1.xpose.msra.mxu0 0.0
        %432 = vmatprep.subr.mxu0 0.0
        %433 = vmatpush1.xpose.msra.mxu0 0.0
        %434 = vmatprep.subr.mxu0 0.0
        %435 = vmatpush1.xpose.msra.mxu0 0.0
        %436 = vmatprep.subr.mxu0 0.0
        %437 = vmatpush1.xpose.msra.mxu0 0.0
        %438 = vmatprep.subr.mxu0 0.0
        %439 = vmatpush1.xpose.msra.mxu0 0.0
        %440 = vmatprep.subr.mxu0 0.0
        %441 = vmatpush1.xpose.msra.mxu0 0.0
        %442 = vmatprep.subr.mxu0 0.0
        %443 = vmatpush1.xpose.msra.mxu0 0.0
        %444 = vmatprep.subr.mxu0 0.0
        %445 = vmatpush1.xpose.msra.mxu0 0.0
        %446 = vmatprep.subr.mxu0 0.0
        %447 = vmatpush1.xpose.msra.mxu0 0.0
        %448 = vmatprep.subr.mxu0 0.0
        %449 = vmatpush1.xpose.msra.mxu0 0.0
        %450 = vmatprep.subr.mxu0 0.0
        %451 = vmatpush1.xpose.msra.mxu0 0.0
        %452 = vmatprep.subr.mxu0 0.0
        %453 = vmatpush1.xpose.msra.mxu0 0.0
        %454 = vmatprep.subr.mxu0 0.0
        %455 = vmatpush1.xpose.msra.mxu0 0.0
        %456 = vmatprep.subr.mxu0 0.0
        %457 = vmatpush1.xpose.msra.mxu0 0.0
        %458 = vmatprep.subr.mxu0 0.0
        %459 = vmatpush1.xpose.msra.mxu0 0.0
        %460 = vmatprep.subr.mxu0 0.0
        %461 = vmatpush1.xpose.msra.mxu0 0.0
        %462 = vmatprep.subr.mxu0 0.0
        %463 = vmatpush1.xpose.msra.mxu0 0.0
        %464 = vmatprep.subr.mxu0 0.0
        %465 = vmatpush1.xpose.msra.mxu0 0.0
        %466 = vmatprep.subr.mxu0 0.0
        %467 = vmatpush1.xpose.msra.mxu0 0.0
        %468 = vmatprep.subr.mxu0 0.0
        %469 = vmatpush1.xpose.msra.mxu0 0.0
        %470 = vmatprep.subr.mxu0 0.0
        %471 = vmatpush1.xpose.msra.mxu0 0.0
        %472 = vmatprep.subr.mxu0 0.0
        %473 = vmatpush1.xpose.msra.mxu0 0.0
        %474 = vmatprep.subr.mxu0 0.0
        %475 = vmatpush1.xpose.msra.mxu0 0.0
        %476 = vmatprep.subr.mxu0 0.0
        %477 = vmatpush1.xpose.msra.mxu0 0.0
        %478 = vmatprep.subr.mxu0 0.0
        %479 = vmatpush1.xpose.msra.mxu0 0.0
        %480 = vmatprep.subr.mxu0 0.0
        %481 = vmatpush1.xpose.msra.mxu0 0.0
        %482 = vmatprep.subr.mxu0 0.0
        %483 = vmatpush1.xpose.msra.mxu0 0.0
        %484 = vmatprep.subr.mxu0 0.0
        %485 = vmatpush1.xpose.msra.mxu0 0.0
        %486 = vmatprep.subr.mxu0 0.0
        %487 = vmatpush1.xpose.msra.mxu0 0.0
        %488 = vmatprep.subr.mxu0 0.0
        %489 = vmatpush1.xpose.msra.mxu0 0.0
        %490 = vmatprep.mubr.f32.mxu0 0.0
        %491 = vmatmul.mubr.f32.gmra.mrb[0].mxu0 %v415
        %v492 = vpop.f32.mrb[0].mxu0
        %v493 = vadd.f32 0.0, %v492
        %v494 = vpop.f32.mrb[0].mxu0
        %495 = vmatprep.mubr.f32.mxu0 0.0
        %496 = vmatmul.mubr.f32.gmra.mrb[0].mxu0 %v418
        %v497 = vpop.f32.mrb[0].mxu0
        %v498 = vadd.f32 0.0, %v497
        %v499 = vpop.f32.mrb[0].mxu0
        %500 = vdwg.mxu0
        %v501 = vlaneseq
        %v502 = vshrl.u32 %v501, 7
        %v503 = vsub.s32 0, %v502
        %v504 = vrot.slane %v396, %v503
        %v505 = vmul.f32 %v493, %v504
        %v506 = vmul.f32 %v498, %v504
        %v507 = vsel %vm394, %v505, 0.0
        %v508 = vsel %vm395, %v506, 0.0
        %v509 = vld [vmem:[%s366] sm:$0xff]
        %v510 = vld [vmem:[%s366 + $0x8] sm:$0xff]
        %v512 = vsel %vm413, %v507, 0
        %v515 = vsel %vm413, %v508, 0
        %517 = vmatprep.subr.mxu0 0.0
        %518 = vmatpush1.msra.mxu0 %v509
        %519 = vmatprep.subr.mxu0 0.0
        %520 = vmatpush1.msra.mxu0 %v510
        %521 = vmatprep.subr.mxu0 0.0
        %522 = vmatpush1.msra.mxu0 0.0
        %523 = vmatprep.subr.mxu0 0.0
        %524 = vmatpush1.msra.mxu0 0.0
        %525 = vmatprep.subr.mxu0 0.0
        %526 = vmatpush1.msra.mxu0 0.0
        %527 = vmatprep.subr.mxu0 0.0
        %528 = vmatpush1.msra.mxu0 0.0
        %529 = vmatprep.subr.mxu0 0.0
        %530 = vmatpush1.msra.mxu0 0.0
        %531 = vmatprep.subr.mxu0 0.0
        %532 = vmatpush1.msra.mxu0 0.0
        %533 = vmatprep.subr.mxu0 0.0
        %534 = vmatpush1.msra.mxu0 0.0
        %535 = vmatprep.subr.mxu0 0.0
        %536 = vmatpush1.msra.mxu0 0.0
        %537 = vmatprep.subr.mxu0 0.0
        %538 = vmatpush1.msra.mxu0 0.0
        %539 = vmatprep.subr.mxu0 0.0
        %540 = vmatpush1.msra.mxu0 0.0
        %541 = vmatprep.subr.mxu0 0.0
        %542 = vmatpush1.msra.mxu0 0.0
        %543 = vmatprep.subr.mxu0 0.0
        %544 = vmatpush1.msra.mxu0 0.0
        %545 = vmatprep.subr.mxu0 0.0
        %546 = vmatpush1.msra.mxu0 0.0
        %547 = vmatprep.subr.mxu0 0.0
        %548 = vmatpush1.msra.mxu0 0.0
        %549 = vmatprep.subr.mxu0 0.0
        %550 = vmatpush1.msra.mxu0 0.0
        %551 = vmatprep.subr.mxu0 0.0
        %552 = vmatpush1.msra.mxu0 0.0
        %553 = vmatprep.subr.mxu0 0.0
        %554 = vmatpush1.msra.mxu0 0.0
        %555 = vmatprep.subr.mxu0 0.0
        %556 = vmatpush1.msra.mxu0 0.0
        %557 = vmatprep.subr.mxu0 0.0
        %558 = vmatpush1.msra.mxu0 0.0
        %559 = vmatprep.subr.mxu0 0.0
        %560 = vmatpush1.msra.mxu0 0.0
        %561 = vmatprep.subr.mxu0 0.0
        %562 = vmatpush1.msra.mxu0 0.0
        %563 = vmatprep.subr.mxu0 0.0
        %564 = vmatpush1.msra.mxu0 0.0
        %565 = vmatprep.subr.mxu0 0.0
        %566 = vmatpush1.msra.mxu0 0.0
        %567 = vmatprep.subr.mxu0 0.0
        %568 = vmatpush1.msra.mxu0 0.0
        %569 = vmatprep.subr.mxu0 0.0
        %570 = vmatpush1.msra.mxu0 0.0
        %571 = vmatprep.subr.mxu0 0.0
        %572 = vmatpush1.msra.mxu0 0.0
        %573 = vmatprep.subr.mxu0 0.0
        %574 = vmatpush1.msra.mxu0 0.0
        %575 = vmatprep.subr.mxu0 0.0
        %576 = vmatpush1.msra.mxu0 0.0
        %577 = vmatprep.subr.mxu0 0.0
        %578 = vmatpush1.msra.mxu0 0.0
        %579 = vmatprep.subr.mxu0 0.0
        %580 = vmatpush1.msra.mxu0 0.0
        %581 = vmatprep.mubr.f32.mxu0 0.0
        %582 = vmatmul.mubr.f32.gmra.mrb[0].mxu0 %v512
        %v583 = vpop.f32.mrb[0].mxu0
        %v584 = vadd.f32 0.0, %v583
        %v585 = vpop.f32.mrb[0].mxu0
        %586 = vmatprep.mubr.f32.mxu0 0.0
        %587 = vmatmul.mubr.f32.gmra.mrb[0].mxu0 %v515
        %v588 = vpop.f32.mrb[0].mxu0
        %v589 = vadd.f32 0.0, %v588
        %v590 = vpop.f32.mrb[0].mxu0
        %591 = vdwg.mxu0
        %v592 = vand.u32 2147483647, %v584
        %v593 = vand.u32 2147483647, %v589
        %596 = vrot.lane.b32.xlu0 %v397, 16
        %v597 = vpop.permute.xlu0 %596
        %598 = vrot.lane.b32.xlu0 %v398, 16
        %v599 = vpop.permute.xlu0 %598
        %v602 = vmax.f32 %v592, %v597
        %v603 = vmax.f32 %v593, %v599
        %v604 = vadd.f32 %v602, 1e-06
        %v605 = vadd.f32 %v603, 1e-06
        %v606 = vrcp.pop %v604
        %v607 = vmul.f32 1.0, %v606
        %v608 = vrcp.pop %v605
        %v609 = vmul.f32 1.0, %v608
        %611 = vset.pattern.permute.xlu0 16
        %612 = vperm.xlu0 %611, %v607
        %v613 = vpop.permute.xlu0 %612
        %616 = vset.pattern.permute.xlu0 16
        %617 = vperm.xlu0 %616, %v609
        %v618 = vpop.permute.xlu0 %617
        %v620 = vmul.f32 %v584, %v613
        %v621 = vmul.f32 %v589, %v618
        %v622 = vsel %vm413, %v620, 0.0
        %623 = vadd.xlane.f32.xlu0 %v622
        %v624 = vpop.xlane.xlu0 %623
        %v625 = vsel %vm413, %v621, 0.0
        %626 = vadd.xlane.f32.xlu0 %v625
        %v627 = vpop.xlane.xlu0 %626
        %v628 = vrcp.pop 16.0
        %v629 = vmul.f32 %v624, %v628
        %v630 = vmul.f32 %v627, %v628
        %v631 = vsub.f32 %v620, %v629
        %v632 = vsub.f32 %v621, %v630
        %v633 = vmul.f32 %v631, %v631
        %v634 = vmul.f32 %v632, %v632
        %v635 = vsel %vm413, %v633, 0.0
        %636 = vadd.xlane.f32.xlu0 %v635
        %v637 = vpop.xlane.xlu0 %636
        %v638 = vsel %vm413, %v634, 0.0
        %639 = vadd.xlane.f32.xlu0 %v638
        %v640 = vpop.xlane.xlu0 %639
        %v641 = vmul.f32 %v637, %v628
        %v642 = vmul.f32 %v640, %v628
        %v643 = vadd.f32 %v641, 1e-05
        %v644 = vadd.f32 %v642, 1e-05
        %v645 = vrsqrt.pop %v643
        %v646 = vrsqrt.pop %v644
        %v647 = vmul.f32 %v631, %v645
        %v648 = vmul.f32 %v632, %v646
        %v650 = vlaneseq
        %v651 = vshrl.u32 %v650, 7
        %v652 = vsub.s32 0, %v651
        %v653 = vrot.slane %v405, %v652
        %v655 = vmul.f32 %v647, %v653
        %v656 = vmul.f32 %v648, %v653
        %657 = vst.msk [vmem:[%s346] sm:$0xff] %vm413, %v655
        %658 = vst.msk [vmem:[%s346 + $0x8] sm:$0xff] %vm413, %v656
        %s659 = scalar_lea.vmem %s355, 16
        %v660 = vld [vmem:[%s659] sm:$0xff]
        %v661 = vld [vmem:[%s659 + $0x8] sm:$0xff]
        %s662 = scalar_lea.vmem %s361, 16
        %v663 = vld [vmem:[%s662] sm:$0xff]
        %v664 = vld [vmem:[%s662 + $0x8] sm:$0xff]
        %v666 = vsel %vm413, %v660, 0
        %v669 = vsel %vm413, %v661, 0
        %v672 = vsel %vm413, %v663, 0
        %v675 = vsel %vm413, %v664, 0
        %677 = vmatprep.subr.mxu0 0.0
        %678 = vmatpush1.xpose.msra.mxu0 %v672
        %679 = vmatprep.subr.mxu0 0.0
        %680 = vmatpush1.xpose.msra.mxu0 %v675
        %681 = vmatprep.subr.mxu0 0.0
        %682 = vmatpush1.xpose.msra.mxu0 0.0
        %683 = vmatprep.subr.mxu0 0.0
        %684 = vmatpush1.xpose.msra.mxu0 0.0
        %685 = vmatprep.subr.mxu0 0.0
        %686 = vmatpush1.xpose.msra.mxu0 0.0
        %687 = vmatprep.subr.mxu0 0.0
        %688 = vmatpush1.xpose.msra.mxu0 0.0
        %689 = vmatprep.subr.mxu0 0.0
        %690 = vmatpush1.xpose.msra.mxu0 0.0
        %691 = vmatprep.subr.mxu0 0.0
        %692 = vmatpush1.xpose.msra.mxu0 0.0
        %693 = vmatprep.subr.mxu0 0.0
        %694 = vmatpush1.xpose.msra.mxu0 0.0
        %695 = vmatprep.subr.mxu0 0.0
        %696 = vmatpush1.xpose.msra.mxu0 0.0
        %697 = vmatprep.subr.mxu0 0.0
        %698 = vmatpush1.xpose.msra.mxu0 0.0
        %699 = vmatprep.subr.mxu0 0.0
        %700 = vmatpush1.xpose.msra.mxu0 0.0
        %701 = vmatprep.subr.mxu0 0.0
        %702 = vmatpush1.xpose.msra.mxu0 0.0
        %703 = vmatprep.subr.mxu0 0.0
        %704 = vmatpush1.xpose.msra.mxu0 0.0
        %705 = vmatprep.subr.mxu0 0.0
        %706 = vmatpush1.xpose.msra.mxu0 0.0
        %707 = vmatprep.subr.mxu0 0.0
        %708 = vmatpush1.xpose.msra.mxu0 0.0
        %709 = vmatprep.subr.mxu0 0.0
        %710 = vmatpush1.xpose.msra.mxu0 0.0
        %711 = vmatprep.subr.mxu0 0.0
        %712 = vmatpush1.xpose.msra.mxu0 0.0
        %713 = vmatprep.subr.mxu0 0.0
        %714 = vmatpush1.xpose.msra.mxu0 0.0
        %715 = vmatprep.subr.mxu0 0.0
        %716 = vmatpush1.xpose.msra.mxu0 0.0
        %717 = vmatprep.subr.mxu0 0.0
        %718 = vmatpush1.xpose.msra.mxu0 0.0
        %719 = vmatprep.subr.mxu0 0.0
        %720 = vmatpush1.xpose.msra.mxu0 0.0
        %721 = vmatprep.subr.mxu0 0.0
        %722 = vmatpush1.xpose.msra.mxu0 0.0
        %723 = vmatprep.subr.mxu0 0.0
        %724 = vmatpush1.xpose.msra.mxu0 0.0
        %725 = vmatprep.subr.mxu0 0.0
        %726 = vmatpush1.xpose.msra.mxu0 0.0
        %727 = vmatprep.subr.mxu0 0.0
        %728 = vmatpush1.xpose.msra.mxu0 0.0
        %729 = vmatprep.subr.mxu0 0.0
        %730 = vmatpush1.xpose.msra.mxu0 0.0
        %731 = vmatprep.subr.mxu0 0.0
        %732 = vmatpush1.xpose.msra.mxu0 0.0
        %733 = vmatprep.subr.mxu0 0.0
        %734 = vmatpush1.xpose.msra.mxu0 0.0
        %735 = vmatprep.subr.mxu0 0.0
        %736 = vmatpush1.xpose.msra.mxu0 0.0
        %737 = vmatprep.subr.mxu0 0.0
        %738 = vmatpush1.xpose.msra.mxu0 0.0
        %739 = vmatprep.subr.mxu0 0.0
        %740 = vmatpush1.xpose.msra.mxu0 0.0
        %741 = vmatprep.mubr.f32.mxu0 0.0
        %742 = vmatmul.mubr.f32.gmra.mrb[0].mxu0 %v666
        %v743 = vpop.f32.mrb[0].mxu0
        %v744 = vadd.f32 0.0, %v743
        %v745 = vpop.f32.mrb[0].mxu0
        %746 = vmatprep.mubr.f32.mxu0 0.0
        %747 = vmatmul.mubr.f32.gmra.mrb[0].mxu0 %v669
        %v748 = vpop.f32.mrb[0].mxu0
        %v749 = vadd.f32 0.0, %v748
        %v750 = vpop.f32.mrb[0].mxu0
        %751 = vdwg.mxu0
        %v752 = vlaneseq
        %v753 = vshrl.u32 %v752, 7
        %v754 = vsub.s32 1, %v753
        %v755 = vrot.slane %v396, %v754
        %v756 = vmul.f32 %v744, %v755
        %v757 = vmul.f32 %v749, %v755
        %v758 = vsel %vm394, %v756, 0.0
        %v759 = vsel %vm395, %v757, 0.0
        %s760 = scalar_lea.vmem %s366, 16
        %v761 = vld [vmem:[%s760] sm:$0xff]
        %v762 = vld [vmem:[%s760 + $0x8] sm:$0xff]
        %v764 = vsel %vm413, %v758, 0
        %v767 = vsel %vm413, %v759, 0
        %769 = vmatprep.subr.mxu0 0.0
        %770 = vmatpush1.msra.mxu0 %v761
        %771 = vmatprep.subr.mxu0 0.0
        %772 = vmatpush1.msra.mxu0 %v762
        %773 = vmatprep.subr.mxu0 0.0
        %774 = vmatpush1.msra.mxu0 0.0
        %775 = vmatprep.subr.mxu0 0.0
        %776 = vmatpush1.msra.mxu0 0.0
        %777 = vmatprep.subr.mxu0 0.0
        %778 = vmatpush1.msra.mxu0 0.0
        %779 = vmatprep.subr.mxu0 0.0
        %780 = vmatpush1.msra.mxu0 0.0
        %781 = vmatprep.subr.mxu0 0.0
        %782 = vmatpush1.msra.mxu0 0.0
        %783 = vmatprep.subr.mxu0 0.0
        %784 = vmatpush1.msra.mxu0 0.0
        %785 = vmatprep.subr.mxu0 0.0
        %786 = vmatpush1.msra.mxu0 0.0
        %787 = vmatprep.subr.mxu0 0.0
        %788 = vmatpush1.msra.mxu0 0.0
        %789 = vmatprep.subr.mxu0 0.0
        %790 = vmatpush1.msra.mxu0 0.0
        %791 = vmatprep.subr.mxu0 0.0
        %792 = vmatpush1.msra.mxu0 0.0
        %793 = vmatprep.subr.mxu0 0.0
        %794 = vmatpush1.msra.mxu0 0.0
        %795 = vmatprep.subr.mxu0 0.0
        %796 = vmatpush1.msra.mxu0 0.0
        %797 = vmatprep.subr.mxu0 0.0
        %798 = vmatpush1.msra.mxu0 0.0
        %799 = vmatprep.subr.mxu0 0.0
        %800 = vmatpush1.msra.mxu0 0.0
        %801 = vmatprep.subr.mxu0 0.0
        %802 = vmatpush1.msra.mxu0 0.0
        %803 = vmatprep.subr.mxu0 0.0
        %804 = vmatpush1.msra.mxu0 0.0
        %805 = vmatprep.subr.mxu0 0.0
        %806 = vmatpush1.msra.mxu0 0.0
        %807 = vmatprep.subr.mxu0 0.0
        %808 = vmatpush1.msra.mxu0 0.0
        %809 = vmatprep.subr.mxu0 0.0
        %810 = vmatpush1.msra.mxu0 0.0
        %811 = vmatprep.subr.mxu0 0.0
        %812 = vmatpush1.msra.mxu0 0.0
        %813 = vmatprep.subr.mxu0 0.0
        %814 = vmatpush1.msra.mxu0 0.0
        %815 = vmatprep.subr.mxu0 0.0
        %816 = vmatpush1.msra.mxu0 0.0
        %817 = vmatprep.subr.mxu0 0.0
        %818 = vmatpush1.msra.mxu0 0.0
        %819 = vmatprep.subr.mxu0 0.0
        %820 = vmatpush1.msra.mxu0 0.0
        %821 = vmatprep.subr.mxu0 0.0
        %822 = vmatpush1.msra.mxu0 0.0
        %823 = vmatprep.subr.mxu0 0.0
        %824 = vmatpush1.msra.mxu0 0.0
        %825 = vmatprep.subr.mxu0 0.0
        %826 = vmatpush1.msra.mxu0 0.0
        %827 = vmatprep.subr.mxu0 0.0
        %828 = vmatpush1.msra.mxu0 0.0
        %829 = vmatprep.subr.mxu0 0.0
        %830 = vmatpush1.msra.mxu0 0.0
        %831 = vmatprep.subr.mxu0 0.0
        %832 = vmatpush1.msra.mxu0 0.0
        %833 = vmatprep.mubr.f32.mxu0 0.0
        %834 = vmatmul.mubr.f32.gmra.mrb[0].mxu0 %v764
        %v835 = vpop.f32.mrb[0].mxu0
        %v836 = vadd.f32 0.0, %v835
        %v837 = vpop.f32.mrb[0].mxu0
        %838 = vmatprep.mubr.f32.mxu0 0.0
        %839 = vmatmul.mubr.f32.gmra.mrb[0].mxu0 %v767
        %v840 = vpop.f32.mrb[0].mxu0
        %v841 = vadd.f32 0.0, %v840
        %v842 = vpop.f32.mrb[0].mxu0
        %843 = vdwg.mxu0
        %v844 = vand.u32 2147483647, %v836
        %v845 = vand.u32 2147483647, %v841
        %848 = vrot.lane.b32.xlu0 %v399, 16
        %v849 = vpop.permute.xlu0 %848
        %850 = vrot.lane.b32.xlu0 %v400, 16
        %v851 = vpop.permute.xlu0 %850
        %v854 = vmax.f32 %v844, %v849
        %v855 = vmax.f32 %v845, %v851
        %v856 = vadd.f32 %v854, 1e-06
        %v857 = vadd.f32 %v855, 1e-06
        %v858 = vrcp.pop %v856
        %v859 = vmul.f32 1.0, %v858
        %v860 = vrcp.pop %v857
        %v861 = vmul.f32 1.0, %v860
        %863 = vset.pattern.permute.xlu0 16
        %864 = vperm.xlu0 %863, %v859
        %v865 = vpop.permute.xlu0 %864
        %868 = vset.pattern.permute.xlu0 16
        %869 = vperm.xlu0 %868, %v861
        %v870 = vpop.permute.xlu0 %869
        %v872 = vmul.f32 %v836, %v865
        %v873 = vmul.f32 %v841, %v870
        %v874 = vsel %vm413, %v872, 0.0
        %875 = vadd.xlane.f32.xlu0 %v874
        %v876 = vpop.xlane.xlu0 %875
        %v877 = vsel %vm413, %v873, 0.0
        %878 = vadd.xlane.f32.xlu0 %v877
        %v879 = vpop.xlane.xlu0 %878
        %v880 = vmul.f32 %v876, %v628
        %v881 = vmul.f32 %v879, %v628
        %v882 = vsub.f32 %v872, %v880
        %v883 = vsub.f32 %v873, %v881
        %v884 = vmul.f32 %v882, %v882
        %v885 = vmul.f32 %v883, %v883
        %v886 = vsel %vm413, %v884, 0.0
        %887 = vadd.xlane.f32.xlu0 %v886
        %v888 = vpop.xlane.xlu0 %887
        %v889 = vsel %vm413, %v885, 0.0
        %890 = vadd.xlane.f32.xlu0 %v889
        %v891 = vpop.xlane.xlu0 %890
        %v892 = vmul.f32 %v888, %v628
        %v893 = vmul.f32 %v891, %v628
        %v894 = vadd.f32 %v892, 1e-05
        %v895 = vadd.f32 %v893, 1e-05
        %v896 = vrsqrt.pop %v894
        %v897 = vrsqrt.pop %v895
        %v898 = vmul.f32 %v882, %v896
        %v899 = vmul.f32 %v883, %v897
        %v901 = vlaneseq
        %v902 = vshrl.u32 %v901, 7
        %v903 = vsub.s32 0, %v902
        %v904 = vrot.slane %v406, %v903
        %v906 = vmul.f32 %v898, %v904
        %v907 = vmul.f32 %v899, %v904
        %910 = vrot.lane.b32.xlu0 %v906, 16
        %v911 = vpop.permute.xlu0 %910
        %912 = vrot.lane.b32.xlu0 %v907, 16
        %v913 = vpop.permute.xlu0 %912
        %vm916 = vcmask 261248
        %917 = vst.msk [vmem:[%s346] sm:$0xff] %vm916, %v911
        %918 = vst.msk [vmem:[%s346 + $0x8] sm:$0xff] %vm916, %v913
        %s919 = scalar_lea.vmem %s355, 32
        %v920 = vld [vmem:[%s919] sm:$0xff]
        %v921 = vld [vmem:[%s919 + $0x8] sm:$0xff]
        %s922 = scalar_lea.vmem %s361, 32
        %v923 = vld [vmem:[%s922] sm:$0xff]
        %v924 = vld [vmem:[%s922 + $0x8] sm:$0xff]
        %v926 = vsel %vm413, %v920, 0
        %v929 = vsel %vm413, %v921, 0
        %v932 = vsel %vm413, %v923, 0
        %v935 = vsel %vm413, %v924, 0
        %937 = vmatprep.subr.mxu0 0.0
        %938 = vmatpush1.xpose.msra.mxu0 %v932
        %939 = vmatprep.subr.mxu0 0.0
        %940 = vmatpush1.xpose.msra.mxu0 %v935
        %941 = vmatprep.subr.mxu0 0.0
        %942 = vmatpush1.xpose.msra.mxu0 0.0
        %943 = vmatprep.subr.mxu0 0.0
        %944 = vmatpush1.xpose.msra.mxu0 0.0
        %945 = vmatprep.subr.mxu0 0.0
        %946 = vmatpush1.xpose.msra.mxu0 0.0
        %947 = vmatprep.subr.mxu0 0.0
        %948 = vmatpush1.xpose.msra.mxu0 0.0
        %949 = vmatprep.subr.mxu0 0.0
        %950 = vmatpush1.xpose.msra.mxu0 0.0
        %951 = vmatprep.subr.mxu0 0.0
        %952 = vmatpush1.xpose.msra.mxu0 0.0
        %953 = vmatprep.subr.mxu0 0.0
        %954 = vmatpush1.xpose.msra.mxu0 0.0
        %955 = vmatprep.subr.mxu0 0.0
        %956 = vmatpush1.xpose.msra.mxu0 0.0
        %957 = vmatprep.subr.mxu0 0.0
        %958 = vmatpush1.xpose.msra.mxu0 0.0
        %959 = vmatprep.subr.mxu0 0.0
        %960 = vmatpush1.xpose.msra.mxu0 0.0
        %961 = vmatprep.subr.mxu0 0.0
        %962 = vmatpush1.xpose.msra.mxu0 0.0
        %963 = vmatprep.subr.mxu0 0.0
        %964 = vmatpush1.xpose.msra.mxu0 0.0
        %965 = vmatprep.subr.mxu0 0.0
        %966 = vmatpush1.xpose.msra.mxu0 0.0
        %967 = vmatprep.subr.mxu0 0.0
        %968 = vmatpush1.xpose.msra.mxu0 0.0
        %969 = vmatprep.subr.mxu0 0.0
        %970 = vmatpush1.xpose.msra.mxu0 0.0
        %971 = vmatprep.subr.mxu0 0.0
        %972 = vmatpush1.xpose.msra.mxu0 0.0
        %973 = vmatprep.subr.mxu0 0.0
        %974 = vmatpush1.xpose.msra.mxu0 0.0
        %975 = vmatprep.subr.mxu0 0.0
        %976 = vmatpush1.xpose.msra.mxu0 0.0
        %977 = vmatprep.subr.mxu0 0.0
        %978 = vmatpush1.xpose.msra.mxu0 0.0
        %979 = vmatprep.subr.mxu0 0.0
        %980 = vmatpush1.xpose.msra.mxu0 0.0
        %981 = vmatprep.subr.mxu0 0.0
        %982 = vmatpush1.xpose.msra.mxu0 0.0
        %983 = vmatprep.subr.mxu0 0.0
        %984 = vmatpush1.xpose.msra.mxu0 0.0
        %985 = vmatprep.subr.mxu0 0.0
        %986 = vmatpush1.xpose.msra.mxu0 0.0
        %987 = vmatprep.subr.mxu0 0.0
        %988 = vmatpush1.xpose.msra.mxu0 0.0
        %989 = vmatprep.subr.mxu0 0.0
        %990 = vmatpush1.xpose.msra.mxu0 0.0
        %991 = vmatprep.subr.mxu0 0.0
        %992 = vmatpush1.xpose.msra.mxu0 0.0
        %993 = vmatprep.subr.mxu0 0.0
        %994 = vmatpush1.xpose.msra.mxu0 0.0
        %995 = vmatprep.subr.mxu0 0.0
        %996 = vmatpush1.xpose.msra.mxu0 0.0
        %997 = vmatprep.subr.mxu0 0.0
        %998 = vmatpush1.xpose.msra.mxu0 0.0
        %999 = vmatprep.subr.mxu0 0.0
        %1000 = vmatpush1.xpose.msra.mxu0 0.0
        %1001 = vmatprep.mubr.f32.mxu0 0.0
        %1002 = vmatmul.mubr.f32.gmra.mrb[0].mxu0 %v926
        %v1003 = vpop.f32.mrb[0].mxu0
        %v1004 = vadd.f32 0.0, %v1003
        %v1005 = vpop.f32.mrb[0].mxu0
        %1006 = vmatprep.mubr.f32.mxu0 0.0
        %1007 = vmatmul.mubr.f32.gmra.mrb[0].mxu0 %v929
        %v1008 = vpop.f32.mrb[0].mxu0
        %v1009 = vadd.f32 0.0, %v1008
        %v1010 = vpop.f32.mrb[0].mxu0
        %1011 = vdwg.mxu0
        %v1012 = vlaneseq
        %v1013 = vshrl.u32 %v1012, 7
        %v1014 = vsub.s32 2, %v1013
        %v1015 = vrot.slane %v396, %v1014
        %v1016 = vmul.f32 %v1004, %v1015
        %v1017 = vmul.f32 %v1009, %v1015
        %v1018 = vsel %vm394, %v1016, 0.0
        %v1019 = vsel %vm395, %v1017, 0.0
        %s1020 = scalar_lea.vmem %s366, 32
        %v1021 = vld [vmem:[%s1020] sm:$0xff]
        %v1022 = vld [vmem:[%s1020 + $0x8] sm:$0xff]
        %v1024 = vsel %vm413, %v1018, 0
        %v1027 = vsel %vm413, %v1019, 0
        %1029 = vmatprep.subr.mxu0 0.0
        %1030 = vmatpush1.msra.mxu0 %v1021
        %1031 = vmatprep.subr.mxu0 0.0
        %1032 = vmatpush1.msra.mxu0 %v1022
        %1033 = vmatprep.subr.mxu0 0.0
        %1034 = vmatpush1.msra.mxu0 0.0
        %1035 = vmatprep.subr.mxu0 0.0
        %1036 = vmatpush1.msra.mxu0 0.0
        %1037 = vmatprep.subr.mxu0 0.0
        %1038 = vmatpush1.msra.mxu0 0.0
        %1039 = vmatprep.subr.mxu0 0.0
        %1040 = vmatpush1.msra.mxu0 0.0
        %1041 = vmatprep.subr.mxu0 0.0
        %1042 = vmatpush1.msra.mxu0 0.0
        %1043 = vmatprep.subr.mxu0 0.0
        %1044 = vmatpush1.msra.mxu0 0.0
        %1045 = vmatprep.subr.mxu0 0.0
        %1046 = vmatpush1.msra.mxu0 0.0
        %1047 = vmatprep.subr.mxu0 0.0
        %1048 = vmatpush1.msra.mxu0 0.0
        %1049 = vmatprep.subr.mxu0 0.0
        %1050 = vmatpush1.msra.mxu0 0.0
        %1051 = vmatprep.subr.mxu0 0.0
        %1052 = vmatpush1.msra.mxu0 0.0
        %1053 = vmatprep.subr.mxu0 0.0
        %1054 = vmatpush1.msra.mxu0 0.0
        %1055 = vmatprep.subr.mxu0 0.0
        %1056 = vmatpush1.msra.mxu0 0.0
        %1057 = vmatprep.subr.mxu0 0.0
        %1058 = vmatpush1.msra.mxu0 0.0
        %1059 = vmatprep.subr.mxu0 0.0
        %1060 = vmatpush1.msra.mxu0 0.0
        %1061 = vmatprep.subr.mxu0 0.0
        %1062 = vmatpush1.msra.mxu0 0.0
        %1063 = vmatprep.subr.mxu0 0.0
        %1064 = vmatpush1.msra.mxu0 0.0
        %1065 = vmatprep.subr.mxu0 0.0
        %1066 = vmatpush1.msra.mxu0 0.0
        %1067 = vmatprep.subr.mxu0 0.0
        %1068 = vmatpush1.msra.mxu0 0.0
        %1069 = vmatprep.subr.mxu0 0.0
        %1070 = vmatpush1.msra.mxu0 0.0
        %1071 = vmatprep.subr.mxu0 0.0
        %1072 = vmatpush1.msra.mxu0 0.0
        %1073 = vmatprep.subr.mxu0 0.0
        %1074 = vmatpush1.msra.mxu0 0.0
        %1075 = vmatprep.subr.mxu0 0.0
        %1076 = vmatpush1.msra.mxu0 0.0
        %1077 = vmatprep.subr.mxu0 0.0
        %1078 = vmatpush1.msra.mxu0 0.0
        %1079 = vmatprep.subr.mxu0 0.0
        %1080 = vmatpush1.msra.mxu0 0.0
        %1081 = vmatprep.subr.mxu0 0.0
        %1082 = vmatpush1.msra.mxu0 0.0
        %1083 = vmatprep.subr.mxu0 0.0
        %1084 = vmatpush1.msra.mxu0 0.0
        %1085 = vmatprep.subr.mxu0 0.0
        %1086 = vmatpush1.msra.mxu0 0.0
        %1087 = vmatprep.subr.mxu0 0.0
        %1088 = vmatpush1.msra.mxu0 0.0
        %1089 = vmatprep.subr.mxu0 0.0
        %1090 = vmatpush1.msra.mxu0 0.0
        %1091 = vmatprep.subr.mxu0 0.0
        %1092 = vmatpush1.msra.mxu0 0.0
        %1093 = vmatprep.mubr.f32.mxu0 0.0
        %1094 = vmatmul.mubr.f32.gmra.mrb[0].mxu0 %v1024
        %v1095 = vpop.f32.mrb[0].mxu0
        %v1096 = vadd.f32 0.0, %v1095
        %v1097 = vpop.f32.mrb[0].mxu0
        %1098 = vmatprep.mubr.f32.mxu0 0.0
        %1099 = vmatmul.mubr.f32.gmra.mrb[0].mxu0 %v1027
        %v1100 = vpop.f32.mrb[0].mxu0
        %v1101 = vadd.f32 0.0, %v1100
        %v1102 = vpop.f32.mrb[0].mxu0
        %1103 = vdwg.mxu0
        %v1104 = vand.u32 2147483647, %v1096
        %v1105 = vand.u32 2147483647, %v1101
        %1108 = vrot.lane.b32.xlu0 %v401, 16
        %v1109 = vpop.permute.xlu0 %1108
        %1110 = vrot.lane.b32.xlu0 %v402, 16
        %v1111 = vpop.permute.xlu0 %1110
        %v1114 = vmax.f32 %v1104, %v1109
        %v1115 = vmax.f32 %v1105, %v1111
        %v1116 = vadd.f32 %v1114, 1e-06
        %v1117 = vadd.f32 %v1115, 1e-06
        %v1118 = vrcp.pop %v1116
        %v1119 = vmul.f32 1.0, %v1118
        %v1120 = vrcp.pop %v1117
        %v1121 = vmul.f32 1.0, %v1120
        %1123 = vset.pattern.permute.xlu0 16
        %1124 = vperm.xlu0 %1123, %v1119
        %v1125 = vpop.permute.xlu0 %1124
        %1128 = vset.pattern.permute.xlu0 16
        %1129 = vperm.xlu0 %1128, %v1121
        %v1130 = vpop.permute.xlu0 %1129
        %v1132 = vmul.f32 %v1096, %v1125
        %v1133 = vmul.f32 %v1101, %v1130
        %v1134 = vsel %vm413, %v1132, 0.0
        %1135 = vadd.xlane.f32.xlu0 %v1134
        %v1136 = vpop.xlane.xlu0 %1135
        %v1137 = vsel %vm413, %v1133, 0.0
        %1138 = vadd.xlane.f32.xlu0 %v1137
        %v1139 = vpop.xlane.xlu0 %1138
        %v1140 = vmul.f32 %v1136, %v628
        %v1141 = vmul.f32 %v1139, %v628
        %v1142 = vsub.f32 %v1132, %v1140
        %v1143 = vsub.f32 %v1133, %v1141
        %v1144 = vmul.f32 %v1142, %v1142
        %v1145 = vmul.f32 %v1143, %v1143
        %v1146 = vsel %vm413, %v1144, 0.0
        %1147 = vadd.xlane.f32.xlu0 %v1146
        %v1148 = vpop.xlane.xlu0 %1147
        %v1149 = vsel %vm413, %v1145, 0.0
        %1150 = vadd.xlane.f32.xlu0 %v1149
        %v1151 = vpop.xlane.xlu0 %1150
        %v1152 = vmul.f32 %v1148, %v628
        %v1153 = vmul.f32 %v1151, %v628
        %v1154 = vadd.f32 %v1152, 1e-05
        %v1155 = vadd.f32 %v1153, 1e-05
        %v1156 = vrsqrt.pop %v1154
        %v1157 = vrsqrt.pop %v1155
        %v1158 = vmul.f32 %v1142, %v1156
        %v1159 = vmul.f32 %v1143, %v1157
        %v1161 = vlaneseq
        %v1162 = vshrl.u32 %v1161, 7
        %v1163 = vsub.s32 0, %v1162
        %v1164 = vrot.slane %v407, %v1163
        %v1166 = vmul.f32 %v1158, %v1164
        %v1167 = vmul.f32 %v1159, %v1164
        %1170 = vrot.lane.b32.xlu0 %v1166, 32
        %v1171 = vpop.permute.xlu0 %1170
        %1172 = vrot.lane.b32.xlu0 %v1167, 32
        %v1173 = vpop.permute.xlu0 %1172
        %vm1176 = vcmask 392448
        %1177 = vst.msk [vmem:[%s346] sm:$0xff] %vm1176, %v1171
        %1178 = vst.msk [vmem:[%s346 + $0x8] sm:$0xff] %vm1176, %v1173
        %s1179 = scalar_lea.vmem %s355, 48
        %v1180 = vld [vmem:[%s1179] sm:$0xff]
        %v1181 = vld [vmem:[%s1179 + $0x8] sm:$0xff]
        %s1182 = scalar_lea.vmem %s361, 48
        %v1183 = vld [vmem:[%s1182] sm:$0xff]
        %v1184 = vld [vmem:[%s1182 + $0x8] sm:$0xff]
        %v1186 = vsel %vm413, %v1180, 0
        %v1189 = vsel %vm413, %v1181, 0
        %v1192 = vsel %vm413, %v1183, 0
        %v1195 = vsel %vm413, %v1184, 0
        %1197 = vmatprep.subr.mxu0 0.0
        %1198 = vmatpush1.xpose.msra.mxu0 %v1192
        %1199 = vmatprep.subr.mxu0 0.0
        %1200 = vmatpush1.xpose.msra.mxu0 %v1195
        %1201 = vmatprep.subr.mxu0 0.0
        %1202 = vmatpush1.xpose.msra.mxu0 0.0
        %1203 = vmatprep.subr.mxu0 0.0
        %1204 = vmatpush1.xpose.msra.mxu0 0.0
        %1205 = vmatprep.subr.mxu0 0.0
        %1206 = vmatpush1.xpose.msra.mxu0 0.0
        %1207 = vmatprep.subr.mxu0 0.0
        %1208 = vmatpush1.xpose.msra.mxu0 0.0
        %1209 = vmatprep.subr.mxu0 0.0
        %1210 = vmatpush1.xpose.msra.mxu0 0.0
        %1211 = vmatprep.subr.mxu0 0.0
        %1212 = vmatpush1.xpose.msra.mxu0 0.0
        %1213 = vmatprep.subr.mxu0 0.0
        %1214 = vmatpush1.xpose.msra.mxu0 0.0
        %1215 = vmatprep.subr.mxu0 0.0
        %1216 = vmatpush1.xpose.msra.mxu0 0.0
        %1217 = vmatprep.subr.mxu0 0.0
        %1218 = vmatpush1.xpose.msra.mxu0 0.0
        %1219 = vmatprep.subr.mxu0 0.0
        %1220 = vmatpush1.xpose.msra.mxu0 0.0
        %1221 = vmatprep.subr.mxu0 0.0
        %1222 = vmatpush1.xpose.msra.mxu0 0.0
        %1223 = vmatprep.subr.mxu0 0.0
        %1224 = vmatpush1.xpose.msra.mxu0 0.0
        %1225 = vmatprep.subr.mxu0 0.0
        %1226 = vmatpush1.xpose.msra.mxu0 0.0
        %1227 = vmatprep.subr.mxu0 0.0
        %1228 = vmatpush1.xpose.msra.mxu0 0.0
        %1229 = vmatprep.subr.mxu0 0.0
        %1230 = vmatpush1.xpose.msra.mxu0 0.0
        %1231 = vmatprep.subr.mxu0 0.0
        %1232 = vmatpush1.xpose.msra.mxu0 0.0
        %1233 = vmatprep.subr.mxu0 0.0
        %1234 = vmatpush1.xpose.msra.mxu0 0.0
        %1235 = vmatprep.subr.mxu0 0.0
        %1236 = vmatpush1.xpose.msra.mxu0 0.0
        %1237 = vmatprep.subr.mxu0 0.0
        %1238 = vmatpush1.xpose.msra.mxu0 0.0
        %1239 = vmatprep.subr.mxu0 0.0
        %1240 = vmatpush1.xpose.msra.mxu0 0.0
        %1241 = vmatprep.subr.mxu0 0.0
        %1242 = vmatpush1.xpose.msra.mxu0 0.0
        %1243 = vmatprep.subr.mxu0 0.0
        %1244 = vmatpush1.xpose.msra.mxu0 0.0
        %1245 = vmatprep.subr.mxu0 0.0
        %1246 = vmatpush1.xpose.msra.mxu0 0.0
        %1247 = vmatprep.subr.mxu0 0.0
        %1248 = vmatpush1.xpose.msra.mxu0 0.0
        %1249 = vmatprep.subr.mxu0 0.0
        %1250 = vmatpush1.xpose.msra.mxu0 0.0
        %1251 = vmatprep.subr.mxu0 0.0
        %1252 = vmatpush1.xpose.msra.mxu0 0.0
        %1253 = vmatprep.subr.mxu0 0.0
        %1254 = vmatpush1.xpose.msra.mxu0 0.0
        %1255 = vmatprep.subr.mxu0 0.0
        %1256 = vmatpush1.xpose.msra.mxu0 0.0
        %1257 = vmatprep.subr.mxu0 0.0
        %1258 = vmatpush1.xpose.msra.mxu0 0.0
        %1259 = vmatprep.subr.mxu0 0.0
        %1260 = vmatpush1.xpose.msra.mxu0 0.0
        %1261 = vmatprep.mubr.f32.mxu0 0.0
        %1262 = vmatmul.mubr.f32.gmra.mrb[0].mxu0 %v1186
        %v1263 = vpop.f32.mrb[0].mxu0
        %v1264 = vadd.f32 0.0, %v1263
        %v1265 = vpop.f32.mrb[0].mxu0
        %1266 = vmatprep.mubr.f32.mxu0 0.0
        %1267 = vmatmul.mubr.f32.gmra.mrb[0].mxu0 %v1189
        %v1268 = vpop.f32.mrb[0].mxu0
        %v1269 = vadd.f32 0.0, %v1268
        %v1270 = vpop.f32.mrb[0].mxu0
        %1271 = vdwg.mxu0
        %v1272 = vlaneseq
        %v1273 = vshrl.u32 %v1272, 7
        %v1274 = vsub.s32 3, %v1273
        %v1275 = vrot.slane %v396, %v1274
        %v1276 = vmul.f32 %v1264, %v1275
        %v1277 = vmul.f32 %v1269, %v1275
        %v1278 = vsel %vm394, %v1276, 0.0
        %v1279 = vsel %vm395, %v1277, 0.0
        %s1280 = scalar_lea.vmem %s366, 48
        %v1281 = vld [vmem:[%s1280] sm:$0xff]
        %v1282 = vld [vmem:[%s1280 + $0x8] sm:$0xff]
        %v1284 = vsel %vm413, %v1278, 0
        %v1287 = vsel %vm413, %v1279, 0
        %1289 = vmatprep.subr.mxu0 0.0
        %1290 = vmatpush1.msra.mxu0 %v1281
        %1291 = vmatprep.subr.mxu0 0.0
        %1292 = vmatpush1.msra.mxu0 %v1282
        %1293 = vmatprep.subr.mxu0 0.0
        %1294 = vmatpush1.msra.mxu0 0.0
        %1295 = vmatprep.subr.mxu0 0.0
        %1296 = vmatpush1.msra.mxu0 0.0
        %1297 = vmatprep.subr.mxu0 0.0
        %1298 = vmatpush1.msra.mxu0 0.0
        %1299 = vmatprep.subr.mxu0 0.0
        %1300 = vmatpush1.msra.mxu0 0.0
        %1301 = vmatprep.subr.mxu0 0.0
        %1302 = vmatpush1.msra.mxu0 0.0
        %1303 = vmatprep.subr.mxu0 0.0
        %1304 = vmatpush1.msra.mxu0 0.0
        %1305 = vmatprep.subr.mxu0 0.0
        %1306 = vmatpush1.msra.mxu0 0.0
        %1307 = vmatprep.subr.mxu0 0.0
        %1308 = vmatpush1.msra.mxu0 0.0
        %1309 = vmatprep.subr.mxu0 0.0
        %1310 = vmatpush1.msra.mxu0 0.0
        %1311 = vmatprep.subr.mxu0 0.0
        %1312 = vmatpush1.msra.mxu0 0.0
        %1313 = vmatprep.subr.mxu0 0.0
        %1314 = vmatpush1.msra.mxu0 0.0
        %1315 = vmatprep.subr.mxu0 0.0
        %1316 = vmatpush1.msra.mxu0 0.0
        %1317 = vmatprep.subr.mxu0 0.0
        %1318 = vmatpush1.msra.mxu0 0.0
        %1319 = vmatprep.subr.mxu0 0.0
        %1320 = vmatpush1.msra.mxu0 0.0
        %1321 = vmatprep.subr.mxu0 0.0
        %1322 = vmatpush1.msra.mxu0 0.0
        %1323 = vmatprep.subr.mxu0 0.0
        %1324 = vmatpush1.msra.mxu0 0.0
        %1325 = vmatprep.subr.mxu0 0.0
        %1326 = vmatpush1.msra.mxu0 0.0
        %1327 = vmatprep.subr.mxu0 0.0
        %1328 = vmatpush1.msra.mxu0 0.0
        %1329 = vmatprep.subr.mxu0 0.0
        %1330 = vmatpush1.msra.mxu0 0.0
        %1331 = vmatprep.subr.mxu0 0.0
        %1332 = vmatpush1.msra.mxu0 0.0
        %1333 = vmatprep.subr.mxu0 0.0
        %1334 = vmatpush1.msra.mxu0 0.0
        %1335 = vmatprep.subr.mxu0 0.0
        %1336 = vmatpush1.msra.mxu0 0.0
        %1337 = vmatprep.subr.mxu0 0.0
        %1338 = vmatpush1.msra.mxu0 0.0
        %1339 = vmatprep.subr.mxu0 0.0
        %1340 = vmatpush1.msra.mxu0 0.0
        %1341 = vmatprep.subr.mxu0 0.0
        %1342 = vmatpush1.msra.mxu0 0.0
        %1343 = vmatprep.subr.mxu0 0.0
        %1344 = vmatpush1.msra.mxu0 0.0
        %1345 = vmatprep.subr.mxu0 0.0
        %1346 = vmatpush1.msra.mxu0 0.0
        %1347 = vmatprep.subr.mxu0 0.0
        %1348 = vmatpush1.msra.mxu0 0.0
        %1349 = vmatprep.subr.mxu0 0.0
        %1350 = vmatpush1.msra.mxu0 0.0
        %1351 = vmatprep.subr.mxu0 0.0
        %1352 = vmatpush1.msra.mxu0 0.0
        %1353 = vmatprep.mubr.f32.mxu0 0.0
        %1354 = vmatmul.mubr.f32.gmra.mrb[0].mxu0 %v1284
        %v1355 = vpop.f32.mrb[0].mxu0
        %v1356 = vadd.f32 0.0, %v1355
        %v1357 = vpop.f32.mrb[0].mxu0
        %1358 = vmatprep.mubr.f32.mxu0 0.0
        %1359 = vmatmul.mubr.f32.gmra.mrb[0].mxu0 %v1287
        %v1360 = vpop.f32.mrb[0].mxu0
        %v1361 = vadd.f32 0.0, %v1360
        %v1362 = vpop.f32.mrb[0].mxu0
        %1363 = vdwg.mxu0
        %v1364 = vand.u32 2147483647, %v1356
        %v1365 = vand.u32 2147483647, %v1361
        %1368 = vrot.lane.b32.xlu0 %v403, 16
        %v1369 = vpop.permute.xlu0 %1368
        %1370 = vrot.lane.b32.xlu0 %v404, 16
        %v1371 = vpop.permute.xlu0 %1370
        %v1374 = vmax.f32 %v1364, %v1369
        %v1375 = vmax.f32 %v1365, %v1371
        %v1376 = vadd.f32 %v1374, 1e-06
        %v1377 = vadd.f32 %v1375, 1e-06
        %v1378 = vrcp.pop %v1376
        %v1379 = vmul.f32 1.0, %v1378
        %v1380 = vrcp.pop %v1377
        %v1381 = vmul.f32 1.0, %v1380
        %1383 = vset.pattern.permute.xlu0 16
        %1384 = vperm.xlu0 %1383, %v1379
        %v1385 = vpop.permute.xlu0 %1384
        %1388 = vset.pattern.permute.xlu0 16
        %1389 = vperm.xlu0 %1388, %v1381
        %v1390 = vpop.permute.xlu0 %1389
        %v1392 = vmul.f32 %v1356, %v1385
        %v1393 = vmul.f32 %v1361, %v1390
        %v1394 = vsel %vm413, %v1392, 0.0
        %1395 = vadd.xlane.f32.xlu0 %v1394
        %v1396 = vpop.xlane.xlu0 %1395
        %v1397 = vsel %vm413, %v1393, 0.0
        %1398 = vadd.xlane.f32.xlu0 %v1397
        %v1399 = vpop.xlane.xlu0 %1398
        %v1400 = vmul.f32 %v1396, %v628
        %v1401 = vmul.f32 %v1399, %v628
        %v1402 = vsub.f32 %v1392, %v1400
        %v1403 = vsub.f32 %v1393, %v1401
        %v1404 = vmul.f32 %v1402, %v1402
        %v1405 = vmul.f32 %v1403, %v1403
        %v1406 = vsel %vm413, %v1404, 0.0
        %1407 = vadd.xlane.f32.xlu0 %v1406
        %v1408 = vpop.xlane.xlu0 %1407
        %v1409 = vsel %vm413, %v1405, 0.0
        %1410 = vadd.xlane.f32.xlu0 %v1409
        %v1411 = vpop.xlane.xlu0 %1410
        %v1412 = vmul.f32 %v1408, %v628
        %v1413 = vmul.f32 %v1411, %v628
        %v1414 = vadd.f32 %v1412, 1e-05
        %v1415 = vadd.f32 %v1413, 1e-05
        %v1416 = vrsqrt.pop %v1414
        %v1417 = vrsqrt.pop %v1415
        %v1418 = vmul.f32 %v1402, %v1416
        %v1419 = vmul.f32 %v1403, %v1417
        %v1421 = vlaneseq
        %v1422 = vshrl.u32 %v1421, 7
        %v1423 = vsub.s32 0, %v1422
        %v1424 = vrot.slane %v408, %v1423
        %v1426 = vmul.f32 %v1418, %v1424
        %v1427 = vmul.f32 %v1419, %v1424
        %1430 = vrot.lane.b32.xlu0 %v1426, 48
        %v1431 = vpop.permute.xlu0 %1430
        %1432 = vrot.lane.b32.xlu0 %v1427, 48
        %v1433 = vpop.permute.xlu0 %1432
        %vm1436 = vcmask 523648
        %1437 = vst.msk [vmem:[%s346] sm:$0xff] %vm1436, %v1431
        %1438 = vst.msk [vmem:[%s346 + $0x8] sm:$0xff] %vm1436, %v1433
        %s1439 = sand.u32 %s199, 1
        %s1440 = scalar_lea.sflag [#allocation3], %s1439
        %s1441 = sand.u32 %s199, 1
        %s1442 = smul.addr %s1441, 16
        %s1443 = scalar_lea.vmem [#allocation2], %s1442
        // Predicated region
        $region45: #{mlstm_cell_forward.1} parent=43 // pred_check
          %p1444 = pneg %p209
        $region46: #{mlstm_cell_forward.1} parent=43 // pred_check_branch
          %1446 = sbr.rel (%p1444) target = $region48
        $region47: #{mlstm_cell_forward.1} parent=43 // pred_region
          %s1447 = smul.u32 2, %s25
          %s1449 = ssub.s32 256, 256
          %1450 = vsyncadd %s1440, %s1449
          %s1451 = smul.addr %s24, 2
          %s1452 = sadd.s32 %s1447, %s1451
          %s1453 = smul.addr %s1452, 128
          %s1454 = scalar_lea.hbm %s6, %s1453
          %s1455 = sshll.u32 %s1443, 4
          %s1456 = int_to_ptr.vmem [resolvable:$true] %s1455
          %1461 = dma.vmem_to_hbm [thread:$0]  %s1456, 256, %s1454, %s1440, 128, 128, 8
        $region48: #{mlstm_cell_forward.1} parent=43 // pred_fallthru
          _
      $region44: #{mlstm_cell_forward.1} parent=5 // pred_fallthru
        _
      %p1462 = scmp.le.s32.totalorder 2, %s15
      // Predicated region
      $region49: #{mlstm_cell_forward.1} parent=5 // pred_check
        %p1463 = pneg %p1462
      $region50: #{mlstm_cell_forward.1} parent=5 // pred_check_branch
        %1465 = sbr.rel (%p1463) target = $region52
      $region51: #{mlstm_cell_forward.1} parent=5 // pred_region
        %s1466 = ssub.s32 %s15, 2
        // Predicated region
        $region53: #{mlstm_cell_forward.1} parent=51 // pred_check
          %p1467 = pneg %p215
        $region54: #{mlstm_cell_forward.1} parent=51 // pred_check_branch
          %1469 = sbr.rel (%p1467) target = $region56
        $region55: #{mlstm_cell_forward.1} parent=51 // pred_region
          %s1470 = sand.u32 %s200, 1
          %s1471 = scalar_lea.sflag [#allocation3], %s1470
          %s1472 = sand.u32 %s200, 1
          %s1473 = smul.addr %s1472, 16
          %s1474 = scalar_lea.vmem [#allocation2], %s1473
          %1475 = dma.done %s1471, 256
        $region56: #{mlstm_cell_forward.1} parent=51 // pred_fallthru
          _
      $region52: #{mlstm_cell_forward.1} parent=5 // pred_fallthru
        _
    $region6: #{mlstm_cell_forward.1} parent=1 // loop_footer
      %s19 = sadd.s32 1, %s15
    $region7: #{mlstm_cell_forward.1} parent=1 // loop_footer_branch
      %14 = sbr.rel target = $region3
    $region8: #{mlstm_cell_forward.1} parent=1 // loop_exit
      _
    %1476 = vsyncpa [#allocation3], 1
    %s1477 = scalar_lea.sflag [#allocation3], 1
    %1478 = vsyncpa %s1477, 1

</llo_original>
